<compile_context>
chip_gen: v6e
topology: v6e:2x2x1
jax: 0.10.0
libtpu: 0.0.40
codegen_flags: <defaults>
</compile_context>

<pallas_src>
import numpy as np
import jax
import jax.numpy as jnp
from jax.experimental import pallas as pl
from jax.experimental.pallas import tpu as pltpu

B_TILE = 8  # batch tile / sublane-aligned batch padding


# ----------------------------- Pallas kernel --------------------------------
def bsg_encoder_kernel(
    merged_ref,   # (S, B, 2D) f32, time-major, batch padded
    maskf_ref,    # (S, B, 1)  f32  (1.0 -> masked)
    wih_ref,      # (2D, 8H)   bf16, columns [fwd | bwd], gate order [i,f,o,g]
    bih_ref,      # (1, 8H)    f32, matching column order (b_ih + b_hh)
    whh_f_ref,    # (H, 4H)    bf16, gate order [i,f,o,g]
    whh_b_ref,    # (H, 4H)    bf16, gate order [i,f,o,g]
    att_w_ref,    # (1, 2H)    f32
    att_b_ref,    # (1, 1)     f32
    uv_w_ref,     # (2H, Wout) bf16, cols [u_w | v_w | 0-pad], Wout mult of 128
    uv_b_ref,     # (1, Wout)  f32
    mu_ref,       # out (B, D) f32
    var_ref,      # out (B, 1) f32
):
    S, B, D2 = merged_ref.shape
    H4 = whh_f_ref.shape[1]
    H = H4 // 4
    D = mu_ref.shape[1]

    maskf = maskf_ref[...]                                  # (S, B, 1)
    x = merged_ref[...] * (1.0 - maskf)                     # masked_fill_(mask, 0)

    # ---- hoisted input projection: one lane-dense matmul for both dirs ----
    xproj = (jnp.dot(x.reshape(S * B, D2).astype(jnp.bfloat16), wih_ref[...],
                     preferred_element_type=jnp.float32)
             + bih_ref[...]).reshape(S, B, 2 * H4)          # (S, B, 8H) f32

    whh_f = whh_f_ref[...]
    whh_b = whh_b_ref[...]

    def lstm_step(gx, h, c, whh):
        # gate columns are pre-ordered [i, f, o | g]
        g = gx + jnp.dot(h.astype(jnp.bfloat16), whh,
                         preferred_element_type=jnp.float32)        # (B, 4H)
        s = jax.nn.sigmoid(g[:, :3 * H])
        i, f, o = s[:, :H], s[:, H:2 * H], s[:, 2 * H:]
        gg = jnp.tanh(g[:, 3 * H:])
        c_new = f * c + i * gg
        h_new = o * jnp.tanh(c_new)
        return h_new, c_new

    zero = jnp.zeros((B, H), jnp.float32)
    hf, cf = zero, zero
    hb, cb = zero, zero
    hf_list = [None] * S
    hb_list = [None] * S
    # Fused, statically unrolled recurrence: both directions step each iter.
    for t in range(S):
        tb = S - 1 - t
        hf, cf = lstm_step(xproj[t][:, :H4], hf, cf, whh_f)
        hb, cb = lstm_step(xproj[tb][:, H4:], hb, cb, whh_b)
        hf_list[t] = hf
        hb_list[tb] = hb

    # ---- attention: per-step lane reductions on register-resident h_t ----
    att_w = att_w_ref[...]                                  # (1, 2H)
    att_b = att_b_ref[...]                                  # (1, 1)
    h2 = [jnp.concatenate([hf_list[t], hb_list[t]], axis=-1)  # (B, 2H), lane-dense
          for t in range(S)]
    scores = []
    for t in range(S):
        s_t = jnp.sum(h2[t] * att_w, axis=-1, keepdims=True) + att_b   # (B, 1)
        scores.append(jnp.where(maskf[t] > 0.5, jnp.float32(-1e5), s_t))
    m = scores[0]
    for t in range(1, S):
        m = jnp.maximum(m, scores[t])
    es = [jnp.exp(scores[t] - m) for t in range(S)]
    denom = es[0]
    for t in range(1, S):
        denom = denom + es[t]
    inv = pl.reciprocal(denom, approx=True)                 # (B, 1)
    h_sum = (es[0] * inv) * h2[0]
    for t in range(1, S):
        h_sum = h_sum + (es[t] * inv) * h2[t]               # (B, 2H)

    # ---- fused output heads: one lane-dense matmul, cols [mu | logvar | pad] ----
    out = (jnp.dot(h_sum.astype(jnp.bfloat16), uv_w_ref[...],
                   preferred_element_type=jnp.float32) + uv_b_ref[...])
    mu_ref[...] = out[:, :D]
    var_ref[...] = jnp.exp(out[:, D:D + 1])


# --------------------------- kernel param prep --------------------------------
def _reorder_gates(w):
    """Reorder last-axis gate blocks [i, f, g, o] -> [i, f, o, g]."""
    h = w.shape[-1] // 4
    return jnp.concatenate([w[..., :2 * h], w[..., 3 * h:], w[..., 2 * h:3 * h]],
                           axis=-1)


def _prepare_kernel_params(params):
    H = params["whh_f"].shape[0]
    D = params["u_w"].shape[1]
    wih = jnp.concatenate([_reorder_gates(params["wih_f"]),
                           _reorder_gates(params["wih_b"])],
                          axis=-1).astype(jnp.bfloat16)          # (2D, 8H)
    bih = jnp.concatenate([_reorder_gates(params["b_f"]),
                           _reorder_gates(params["b_b"])], axis=-1)   # (1, 8H)
    whh_f = _reorder_gates(params["whh_f"]).astype(jnp.bfloat16)  # (H, 4H)
    whh_b = _reorder_gates(params["whh_b"]).astype(jnp.bfloat16)
    att_w = params["att_w"].T                                     # (1, 2H)
    att_b = params["att_b"]                                       # (1, 1)
    w_out = ((D + 1 + 127) // 128) * 128                          # lane-dense pad
    uv_w = jnp.zeros((2 * H, w_out), jnp.float32)
    uv_w = uv_w.at[:, :D].set(params["u_w"]).at[:, D:D + 1].set(params["v_w"])
    uv_b = jnp.zeros((1, w_out), jnp.float32)
    uv_b = uv_b.at[:, :D].set(params["u_b"]).at[:, D:D + 1].set(params["v_b"])
    return dict(wih=wih, bih=bih, whh_f=whh_f, whh_b=whh_b,
                att_w=att_w, att_b=att_b,
                uv_w=uv_w.astype(jnp.bfloat16), uv_b=uv_b)


# ------------------------------- wrapper -------------------------------------
@jax.jit
def bsg_encoder_pallas(merged, maskf3, params):
    B, S, D2 = merged.shape
    H = params["whh_f"].shape[0]
    H4 = 4 * H
    D = params["u_w"].shape[1]

    kp = _prepare_kernel_params(params)
    w_out = kp["uv_w"].shape[1]

    # pad batch to a sublane multiple; padded rows are fully masked
    B_pad = ((B + B_TILE - 1) // B_TILE) * B_TILE
    if B_pad != B:
        merged = jnp.pad(merged, ((0, B_pad - B), (0, 0), (0, 0)))
        maskf3 = jnp.pad(maskf3, ((0, B_pad - B), (0, 0), (0, 0)),
                         constant_values=1.0)
    merged_t = jnp.transpose(merged, (1, 0, 2))     # (S, B_pad, 2D) time-major
    maskf_t = jnp.transpose(maskf3, (1, 0, 2))      # (S, B_pad, 1)

    grid = (B_pad // B_TILE,)
    in_specs = [
        pl.BlockSpec((S, B_TILE, D2), lambda i: (0, i, 0)),
        pl.BlockSpec((S, B_TILE, 1), lambda i: (0, i, 0)),
        pl.BlockSpec((D2, 2 * H4), lambda i: (0, 0)),
        pl.BlockSpec((1, 2 * H4), lambda i: (0, 0)),
        pl.BlockSpec((H, H4), lambda i: (0, 0)),
        pl.BlockSpec((H, H4), lambda i: (0, 0)),
        pl.BlockSpec((1, 2 * H), lambda i: (0, 0)),
        pl.BlockSpec((1, 1), lambda i: (0, 0)),
        pl.BlockSpec((2 * H, w_out), lambda i: (0, 0)),
        pl.BlockSpec((1, w_out), lambda i: (0, 0)),
    ]
    out_specs = (
        pl.BlockSpec((B_TILE, D), lambda i: (i, 0)),
        pl.BlockSpec((B_TILE, 1), lambda i: (i, 0)),
    )

    mu_pad, var_pad = pl.pallas_call(
        bsg_encoder_kernel,
        grid=grid,
        in_specs=in_specs,
        out_specs=out_specs,
        out_shape=(
            jax.ShapeDtypeStruct((B_pad, D), jnp.float32),
            jax.ShapeDtypeStruct((B_pad, 1), jnp.float32),
        ),
        compiler_params=pltpu.CompilerParams(
            dimension_semantics=("parallel",)),
    )(merged_t, maskf_t, kp["wih"], kp["bih"], kp["whh_f"], kp["whh_b"],
      kp["att_w"], kp["att_b"], kp["uv_w"], kp["uv_b"])

    return mu_pad[:B], var_pad[:B]


# --------------------------- pure-JAX reference -------------------------------
def bsg_encoder_reference(merged, maskf3, params):
    B, S, D2 = merged.shape
    H = params["whh_f"].shape[0]
    x = merged * (1.0 - maskf3)

    def cell(x_t, h, c, wih, whh, b):
        g = x_t @ wih + h @ whh + b
        i = jax.nn.sigmoid(g[:, :H])
        f = jax.nn.sigmoid(g[:, H:2 * H])
        gg = jnp.tanh(g[:, 2 * H:3 * H])
        o = jax.nn.sigmoid(g[:, 3 * H:])
        c = f * c + i * gg
        h = o * jnp.tanh(c)
        return h, c

    h = jnp.zeros((B, H), jnp.float32)
    c = jnp.zeros((B, H), jnp.float32)
    hf = []
    for t in range(S):
        h, c = cell(x[:, t], h, c, params["wih_f"], params["whh_f"], params["b_f"])
        hf.append(h)
    h = jnp.zeros((B, H), jnp.float32)
    c = jnp.zeros((B, H), jnp.float32)
    hb = [None] * S
    for t in range(S - 1, -1, -1):
        h, c = cell(x[:, t], h, c, params["wih_b"], params["whh_b"], params["b_b"])
        hb[t] = h
    h_reps = jnp.concatenate([jnp.stack(hf, 1), jnp.stack(hb, 1)], axis=-1)

    scores = h_reps @ params["att_w"] + params["att_b"]          # (B, S, 1)
    scores = jnp.where(maskf3 > 0.5, -1e5, scores)
    w = jax.nn.softmax(scores, axis=1)
    h_sum = jnp.sum(w * h_reps, axis=1)
    mu = h_sum @ params["u_w"] + params["u_b"]
    var = jnp.exp(h_sum @ params["v_w"] + params["v_b"])
    return mu, var


# ------------------------------ param setup -----------------------------------
def make_params(key, vocab_size, input_dim, hidden_dim):
    D, H = input_dim, hidden_dim
    ks = jax.random.split(key, 16)
    k_lstm = 1.0 / np.sqrt(H)

    def unif(k, shape, bound):
        return jax.random.uniform(k, shape, jnp.float32, -bound, bound)

    emb = jax.random.normal(ks[0], (vocab_size, D), jnp.float32)
    emb = emb.at[0].set(0.0)                                     # padding_idx=0

    params = dict(
        emb=emb,
        # bidirectional LSTM, PyTorch (4H, in) convention -> transposed to (in, 4H)
        wih_f=unif(ks[1], (4 * H, 2 * D), k_lstm).T,
        whh_f=unif(ks[2], (4 * H, H), k_lstm).T,
        b_f=(unif(ks[3], (4 * H,), k_lstm)
             + unif(ks[4], (4 * H,), k_lstm)).reshape(1, 4 * H),
        wih_b=unif(ks[5], (4 * H, 2 * D), k_lstm).T,
        whh_b=unif(ks[6], (4 * H, H), k_lstm).T,
        b_b=(unif(ks[7], (4 * H,), k_lstm)
             + unif(ks[8], (4 * H,), k_lstm)).reshape(1, 4 * H),
        # att: Linear(2H, 1), u: Linear(2H, D), v: Linear(2H, 1)
        att_w=unif(ks[9], (1, 2 * H), 1.0 / np.sqrt(2 * H)).T,
        att_b=unif(ks[10], (1, 1), 1.0 / np.sqrt(2 * H)),
        u_w=unif(ks[11], (D, 2 * H), 1.0 / np.sqrt(2 * H)).T,
        u_b=unif(ks[12], (1, D), 1.0 / np.sqrt(2 * H)),
        v_w=unif(ks[13], (1, 2 * H), 1.0 / np.sqrt(2 * H)).T,
        v_b=unif(ks[14], (1, 1), 1.0 / np.sqrt(2 * H)),
    )
    return params


# ------------------------------- main -----------------------------------------
if __name__ == "__main__":
    VOCAB = 50
    INPUT_DIM = 64     # input_dim (latent dim of mu)
    HIDDEN_DIM = 64    # LSTM hidden_dim (bidirectional -> 2H features)
    B = 4              # batch_size (padded to 8 inside the wrapper)
    S = 8              # 2 * context_window
    TOKEN_MASK_P = 0.2

    key = jax.random.PRNGKey(0)
    k_params, k_center, k_ctx, k_tokmask = jax.random.split(key, 4)
    params = make_params(k_params, VOCAB, INPUT_DIM, HIDDEN_DIM)

    center_ids = jax.random.randint(k_center, (B,), 1, VOCAB)
    context_ids = jax.random.randint(k_ctx, (B, S), 0, VOCAB)     # some zeros => padding
    mask = (context_ids == 0)                                     # padding mask

    # token_mask_p augmentation (stochastic in torch; deterministic key here)
    context_mask = jax.random.uniform(k_tokmask, (B, S)) < TOKEN_MASK_P
    mask = jnp.logical_or(mask, context_mask)

    # embedding lookups + concat (glue, outside the kernel)
    center_emb = params["emb"][center_ids]                        # (B, D)
    context_emb = params["emb"][context_ids]                      # (B, S, D)
    center_tiled = jnp.broadcast_to(center_emb[:, None, :], (B, S, INPUT_DIM))
    merged = jnp.concatenate([center_tiled, context_emb], axis=-1).astype(jnp.float32)
    maskf3 = mask.astype(jnp.float32)[:, :, None]                 # (B, S, 1)

    mu, var = bsg_encoder_pallas(merged, maskf3, params)
    jax.block_until_ready((mu, var))

    mu_ref, var_ref = bsg_encoder_reference(merged, maskf3, params)
    # bf16 MXU operands (f32 accumulation) vs f32 reference
    np.testing.assert_allclose(np.asarray(mu), np.asarray(mu_ref), rtol=2e-2, atol=2e-2)
    np.testing.assert_allclose(np.asarray(var), np.asarray(var_ref), rtol=2e-2, atol=2e-2)
    assert mu.shape == (B, INPUT_DIM) and var.shape == (B, 1)

    print("KERNEL_OK")
</pallas_src>

<mosaic_0001>
module attributes {stable_mosaic.version = 11 : i64} {
  func.func @bsg_encoder_kernel(%arg0: i32, %arg1: memref<8x8x128xf32, #tpu.memory_space<vmem>>, %arg2: memref<8x8x1xf32, #tpu.memory_space<vmem>>, %arg3: memref<128x512xbf16, #tpu.memory_space<vmem>>, %arg4: memref<1x512xf32, #tpu.memory_space<vmem>>, %arg5: memref<64x256xbf16, #tpu.memory_space<vmem>>, %arg6: memref<64x256xbf16, #tpu.memory_space<vmem>>, %arg7: memref<1x128xf32, #tpu.memory_space<vmem>>, %arg8: memref<1x1xf32, #tpu.memory_space<vmem>>, %arg9: memref<128x128xbf16, #tpu.memory_space<vmem>>, %arg10: memref<1x128xf32, #tpu.memory_space<vmem>>, %arg11: memref<8x64xf32, #tpu.memory_space<vmem>>, %arg12: memref<8x1xf32, #tpu.memory_space<vmem>>) attributes {dimension_semantics = [#tpu.dimension_semantics<parallel>], iteration_bounds = array<i64: 1>, scalar_prefetch = 0 : i64, scratch_operands = 0 : i64, tpu.core_type = #tpu.core_type<tc>, window_params = [{transform_indices = @transform_0, window_bounds = array<i64: 8, 8, 128>}, {transform_indices = @transform_1, window_bounds = array<i64: 8, 8, 1>}, {pipeline_mode = #tpu.pipeline_mode<synchronous>, transform_indices = @transform_2, window_bounds = array<i64: 128, 512>}, {pipeline_mode = #tpu.pipeline_mode<synchronous>, transform_indices = @transform_3, window_bounds = array<i64: 1, 512>}, {pipeline_mode = #tpu.pipeline_mode<synchronous>, transform_indices = @transform_4, window_bounds = array<i64: 64, 256>}, {pipeline_mode = #tpu.pipeline_mode<synchronous>, transform_indices = @transform_5, window_bounds = array<i64: 64, 256>}, {pipeline_mode = #tpu.pipeline_mode<synchronous>, transform_indices = @transform_6, window_bounds = array<i64: 1, 128>}, {pipeline_mode = #tpu.pipeline_mode<synchronous>, transform_indices = @transform_7, window_bounds = array<i64: 1, 1>}, {pipeline_mode = #tpu.pipeline_mode<synchronous>, transform_indices = @transform_8, window_bounds = array<i64: 128, 128>}, {pipeline_mode = #tpu.pipeline_mode<synchronous>, transform_indices = @transform_9, window_bounds = array<i64: 1, 128>}, {transform_indices = @transform_10, window_bounds = array<i64: 8, 64>}, {transform_indices = @transform_11, window_bounds = array<i64: 8, 1>}]} {
    %c0 = arith.constant 0 : index
    %c0_0 = arith.constant 0 : index
    %c0_1 = arith.constant 0 : index
    %0 = vector.load %arg2[%c0, %c0_0, %c0_1] : memref<8x8x1xf32, #tpu.memory_space<vmem>>, vector<8x8x1xf32>
    %c0_2 = arith.constant 0 : index
    %c0_3 = arith.constant 0 : index
    %c0_4 = arith.constant 0 : index
    %1 = vector.load %arg1[%c0_2, %c0_3, %c0_4] : memref<8x8x128xf32, #tpu.memory_space<vmem>>, vector<8x8x128xf32>
    %cst = arith.constant 1.000000e+00 : f32
    %2 = vector.broadcast %cst : f32 to vector<8x8x1xf32>
    %3 = arith.subf %2, %0 : vector<8x8x1xf32>
    %4 = vector.broadcast %3 : vector<8x8x1xf32> to vector<8x8x128xf32>
    %5 = arith.mulf %1, %4 : vector<8x8x128xf32>
    %6 = vector.shape_cast %5 : vector<8x8x128xf32> to vector<64x128xf32>
    %7 = arith.truncf %6 : vector<64x128xf32> to vector<64x128xbf16>
    %c0_5 = arith.constant 0 : index
    %c0_6 = arith.constant 0 : index
    %8 = vector.load %arg3[%c0_5, %c0_6] : memref<128x512xbf16, #tpu.memory_space<vmem>>, vector<128x512xbf16>
    %cst_7 = arith.constant dense<0.000000e+00> : vector<64x512xf32>
    %9 = tpu.matmul %7, %8, %cst_7 {dimension_numbers = #tpu.dot_dimension_numbers<[1], [0], [0], [1], [0, 0, 1, 1], [], []>} : vector<64x128xbf16>, vector<128x512xbf16>, vector<64x512xf32> -> vector<64x512xf32>
    %c0_8 = arith.constant 0 : index
    %c0_9 = arith.constant 0 : index
    %10 = vector.load %arg4[%c0_8, %c0_9] : memref<1x512xf32, #tpu.memory_space<vmem>>, vector<1x512xf32>
    %11 = vector.broadcast %10 : vector<1x512xf32> to vector<64x512xf32>
    %12 = arith.addf %9, %11 : vector<64x512xf32>
    %13 = vector.shape_cast %12 : vector<64x512xf32> to vector<8x8x512xf32>
    %c0_10 = arith.constant 0 : index
    %c0_11 = arith.constant 0 : index
    %14 = vector.load %arg5[%c0_10, %c0_11] : memref<64x256xbf16, #tpu.memory_space<vmem>>, vector<64x256xbf16>
    %c0_12 = arith.constant 0 : index
    %c0_13 = arith.constant 0 : index
    %15 = vector.load %arg6[%c0_12, %c0_13] : memref<64x256xbf16, #tpu.memory_space<vmem>>, vector<64x256xbf16>
    %cst_14 = arith.constant 0.000000e+00 : f32
    %16 = vector.broadcast %cst_14 : f32 to vector<8x64xf32>
    %17 = vector.extract_strided_slice %13 {offsets = [0, 0, 0], sizes = [1, 8, 512], strides = [1, 1, 1]} : vector<8x8x512xf32> to vector<1x8x512xf32>
    %18 = vector.shape_cast %17 : vector<1x8x512xf32> to vector<8x512xf32>
    %19 = vector.extract_strided_slice %18 {offsets = [0, 0], sizes = [8, 256], strides = [1, 1]} : vector<8x512xf32> to vector<8x256xf32>
    %20 = arith.truncf %16 : vector<8x64xf32> to vector<8x64xbf16>
    %cst_15 = arith.constant dense<0.000000e+00> : vector<8x256xf32>
    %21 = tpu.matmul %20, %14, %cst_15 {dimension_numbers = #tpu.dot_dimension_numbers<[1], [0], [0], [1], [0, 0, 1, 1], [], []>} : vector<8x64xbf16>, vector<64x256xbf16>, vector<8x256xf32> -> vector<8x256xf32>
    %22 = arith.addf %19, %21 : vector<8x256xf32>
    %23 = vector.extract_strided_slice %22 {offsets = [0, 0], sizes = [8, 192], strides = [1, 1]} : vector<8x256xf32> to vector<8x192xf32>
    %24 = arith.negf %23 : vector<8x192xf32>
    %25 = math.exp %24 : vector<8x192xf32>
    %cst_16 = arith.constant 1.000000e+00 : f32
    %26 = vector.broadcast %cst_16 : f32 to vector<8x192xf32>
    %27 = arith.addf %26, %25 : vector<8x192xf32>
    %28 = arith.divf %26, %27 : vector<8x192xf32>
    %29 = vector.extract_strided_slice %28 {offsets = [0, 0], sizes = [8, 64], strides = [1, 1]} : vector<8x192xf32> to vector<8x64xf32>
    %30 = vector.extract_strided_slice %28 {offsets = [0, 64], sizes = [8, 64], strides = [1, 1]} : vector<8x192xf32> to vector<8x64xf32>
    %31 = vector.extract_strided_slice %28 {offsets = [0, 128], sizes = [8, 64], strides = [1, 1]} : vector<8x192xf32> to vector<8x64xf32>
    %32 = vector.extract_strided_slice %22 {offsets = [0, 192], sizes = [8, 64], strides = [1, 1]} : vector<8x256xf32> to vector<8x64xf32>
    %33 = math.tanh %32 : vector<8x64xf32>
    %34 = arith.mulf %30, %16 : vector<8x64xf32>
    %35 = arith.mulf %29, %33 : vector<8x64xf32>
    %36 = arith.addf %34, %35 : vector<8x64xf32>
    %37 = math.tanh %36 : vector<8x64xf32>
    %38 = arith.mulf %31, %37 : vector<8x64xf32>
    %39 = vector.extract_strided_slice %13 {offsets = [7, 0, 0], sizes = [1, 8, 512], strides = [1, 1, 1]} : vector<8x8x512xf32> to vector<1x8x512xf32>
    %40 = vector.shape_cast %39 : vector<1x8x512xf32> to vector<8x512xf32>
    %41 = vector.extract_strided_slice %40 {offsets = [0, 256], sizes = [8, 256], strides = [1, 1]} : vector<8x512xf32> to vector<8x256xf32>
    %42 = arith.truncf %16 : vector<8x64xf32> to vector<8x64xbf16>
    %cst_17 = arith.constant dense<0.000000e+00> : vector<8x256xf32>
    %43 = tpu.matmul %42, %15, %cst_17 {dimension_numbers = #tpu.dot_dimension_numbers<[1], [0], [0], [1], [0, 0, 1, 1], [], []>} : vector<8x64xbf16>, vector<64x256xbf16>, vector<8x256xf32> -> vector<8x256xf32>
    %44 = arith.addf %41, %43 : vector<8x256xf32>
    %45 = vector.extract_strided_slice %44 {offsets = [0, 0], sizes = [8, 192], strides = [1, 1]} : vector<8x256xf32> to vector<8x192xf32>
    %46 = arith.negf %45 : vector<8x192xf32>
    %47 = math.exp %46 : vector<8x192xf32>
    %cst_18 = arith.constant 1.000000e+00 : f32
    %48 = vector.broadcast %cst_18 : f32 to vector<8x192xf32>
    %49 = arith.addf %48, %47 : vector<8x192xf32>
    %50 = arith.divf %48, %49 : vector<8x192xf32>
    %51 = vector.extract_strided_slice %50 {offsets = [0, 0], sizes = [8, 64], strides = [1, 1]} : vector<8x192xf32> to vector<8x64xf32>
    %52 = vector.extract_strided_slice %50 {offsets = [0, 64], sizes = [8, 64], strides = [1, 1]} : vector<8x192xf32> to vector<8x64xf32>
    %53 = vector.extract_strided_slice %50 {offsets = [0, 128], sizes = [8, 64], strides = [1, 1]} : vector<8x192xf32> to vector<8x64xf32>
    %54 = vector.extract_strided_slice %44 {offsets = [0, 192], sizes = [8, 64], strides = [1, 1]} : vector<8x256xf32> to vector<8x64xf32>
    %55 = math.tanh %54 : vector<8x64xf32>
    %56 = arith.mulf %52, %16 : vector<8x64xf32>
    %57 = arith.mulf %51, %55 : vector<8x64xf32>
    %58 = arith.addf %56, %57 : vector<8x64xf32>
    %59 = math.tanh %58 : vector<8x64xf32>
    %60 = arith.mulf %53, %59 : vector<8x64xf32>
    %61 = vector.extract_strided_slice %13 {offsets = [1, 0, 0], sizes = [1, 8, 512], strides = [1, 1, 1]} : vector<8x8x512xf32> to vector<1x8x512xf32>
    %62 = vector.shape_cast %61 : vector<1x8x512xf32> to vector<8x512xf32>
    %63 = vector.extract_strided_slice %62 {offsets = [0, 0], sizes = [8, 256], strides = [1, 1]} : vector<8x512xf32> to vector<8x256xf32>
    %64 = arith.truncf %38 : vector<8x64xf32> to vector<8x64xbf16>
    %cst_19 = arith.constant dense<0.000000e+00> : vector<8x256xf32>
    %65 = tpu.matmul %64, %14, %cst_19 {dimension_numbers = #tpu.dot_dimension_numbers<[1], [0], [0], [1], [0, 0, 1, 1], [], []>} : vector<8x64xbf16>, vector<64x256xbf16>, vector<8x256xf32> -> vector<8x256xf32>
    %66 = arith.addf %63, %65 : vector<8x256xf32>
    %67 = vector.extract_strided_slice %66 {offsets = [0, 0], sizes = [8, 192], strides = [1, 1]} : vector<8x256xf32> to vector<8x192xf32>
    %68 = arith.negf %67 : vector<8x192xf32>
    %69 = math.exp %68 : vector<8x192xf32>
    %cst_20 = arith.constant 1.000000e+00 : f32
    %70 = vector.broadcast %cst_20 : f32 to vector<8x192xf32>
    %71 = arith.addf %70, %69 : vector<8x192xf32>
    %72 = arith.divf %70, %71 : vector<8x192xf32>
    %73 = vector.extract_strided_slice %72 {offsets = [0, 0], sizes = [8, 64], strides = [1, 1]} : vector<8x192xf32> to vector<8x64xf32>
    %74 = vector.extract_strided_slice %72 {offsets = [0, 64], sizes = [8, 64], strides = [1, 1]} : vector<8x192xf32> to vector<8x64xf32>
    %75 = vector.extract_strided_slice %72 {offsets = [0, 128], sizes = [8, 64], strides = [1, 1]} : vector<8x192xf32> to vector<8x64xf32>
    %76 = vector.extract_strided_slice %66 {offsets = [0, 192], sizes = [8, 64], strides = [1, 1]} : vector<8x256xf32> to vector<8x64xf32>
    %77 = math.tanh %76 : vector<8x64xf32>
    %78 = arith.mulf %74, %36 : vector<8x64xf32>
    %79 = arith.mulf %73, %77 : vector<8x64xf32>
    %80 = arith.addf %78, %79 : vector<8x64xf32>
    %81 = math.tanh %80 : vector<8x64xf32>
    %82 = arith.mulf %75, %81 : vector<8x64xf32>
    %83 = vector.extract_strided_slice %13 {offsets = [6, 0, 0], sizes = [1, 8, 512], strides = [1, 1, 1]} : vector<8x8x512xf32> to vector<1x8x512xf32>
    %84 = vector.shape_cast %83 : vector<1x8x512xf32> to vector<8x512xf32>
    %85 = vector.extract_strided_slice %84 {offsets = [0, 256], sizes = [8, 256], strides = [1, 1]} : vector<8x512xf32> to vector<8x256xf32>
    %86 = arith.truncf %60 : vector<8x64xf32> to vector<8x64xbf16>
    %cst_21 = arith.constant dense<0.000000e+00> : vector<8x256xf32>
    %87 = tpu.matmul %86, %15, %cst_21 {dimension_numbers = #tpu.dot_dimension_numbers<[1], [0], [0], [1], [0, 0, 1, 1], [], []>} : vector<8x64xbf16>, vector<64x256xbf16>, vector<8x256xf32> -> vector<8x256xf32>
    %88 = arith.addf %85, %87 : vector<8x256xf32>
    %89 = vector.extract_strided_slice %88 {offsets = [0, 0], sizes = [8, 192], strides = [1, 1]} : vector<8x256xf32> to vector<8x192xf32>
    %90 = arith.negf %89 : vector<8x192xf32>
    %91 = math.exp %90 : vector<8x192xf32>
    %cst_22 = arith.constant 1.000000e+00 : f32
    %92 = vector.broadcast %cst_22 : f32 to vector<8x192xf32>
    %93 = arith.addf %92, %91 : vector<8x192xf32>
    %94 = arith.divf %92, %93 : vector<8x192xf32>
    %95 = vector.extract_strided_slice %94 {offsets = [0, 0], sizes = [8, 64], strides = [1, 1]} : vector<8x192xf32> to vector<8x64xf32>
    %96 = vector.extract_strided_slice %94 {offsets = [0, 64], sizes = [8, 64], strides = [1, 1]} : vector<8x192xf32> to vector<8x64xf32>
    %97 = vector.extract_strided_slice %94 {offsets = [0, 128], sizes = [8, 64], strides = [1, 1]} : vector<8x192xf32> to vector<8x64xf32>
    %98 = vector.extract_strided_slice %88 {offsets = [0, 192], sizes = [8, 64], strides = [1, 1]} : vector<8x256xf32> to vector<8x64xf32>
    %99 = math.tanh %98 : vector<8x64xf32>
    %100 = arith.mulf %96, %58 : vector<8x64xf32>
    %101 = arith.mulf %95, %99 : vector<8x64xf32>
    %102 = arith.addf %100, %101 : vector<8x64xf32>
    %103 = math.tanh %102 : vector<8x64xf32>
    %104 = arith.mulf %97, %103 : vector<8x64xf32>
    %105 = vector.extract_strided_slice %13 {offsets = [2, 0, 0], sizes = [1, 8, 512], strides = [1, 1, 1]} : vector<8x8x512xf32> to vector<1x8x512xf32>
    %106 = vector.shape_cast %105 : vector<1x8x512xf32> to vector<8x512xf32>
    %107 = vector.extract_strided_slice %106 {offsets = [0, 0], sizes = [8, 256], strides = [1, 1]} : vector<8x512xf32> to vector<8x256xf32>
    %108 = arith.truncf %82 : vector<8x64xf32> to vector<8x64xbf16>
    %cst_23 = arith.constant dense<0.000000e+00> : vector<8x256xf32>
    %109 = tpu.matmul %108, %14, %cst_23 {dimension_numbers = #tpu.dot_dimension_numbers<[1], [0], [0], [1], [0, 0, 1, 1], [], []>} : vector<8x64xbf16>, vector<64x256xbf16>, vector<8x256xf32> -> vector<8x256xf32>
    %110 = arith.addf %107, %109 : vector<8x256xf32>
    %111 = vector.extract_strided_slice %110 {offsets = [0, 0], sizes = [8, 192], strides = [1, 1]} : vector<8x256xf32> to vector<8x192xf32>
    %112 = arith.negf %111 : vector<8x192xf32>
    %113 = math.exp %112 : vector<8x192xf32>
    %cst_24 = arith.constant 1.000000e+00 : f32
    %114 = vector.broadcast %cst_24 : f32 to vector<8x192xf32>
    %115 = arith.addf %114, %113 : vector<8x192xf32>
    %116 = arith.divf %114, %115 : vector<8x192xf32>
    %117 = vector.extract_strided_slice %116 {offsets = [0, 0], sizes = [8, 64], strides = [1, 1]} : vector<8x192xf32> to vector<8x64xf32>
    %118 = vector.extract_strided_slice %116 {offsets = [0, 64], sizes = [8, 64], strides = [1, 1]} : vector<8x192xf32> to vector<8x64xf32>
    %119 = vector.extract_strided_slice %116 {offsets = [0, 128], sizes = [8, 64], strides = [1, 1]} : vector<8x192xf32> to vector<8x64xf32>
    %120 = vector.extract_strided_slice %110 {offsets = [0, 192], sizes = [8, 64], strides = [1, 1]} : vector<8x256xf32> to vector<8x64xf32>
    %121 = math.tanh %120 : vector<8x64xf32>
    %122 = arith.mulf %118, %80 : vector<8x64xf32>
    %123 = arith.mulf %117, %121 : vector<8x64xf32>
    %124 = arith.addf %122, %123 : vector<8x64xf32>
    %125 = math.tanh %124 : vector<8x64xf32>
    %126 = arith.mulf %119, %125 : vector<8x64xf32>
    %127 = vector.extract_strided_slice %13 {offsets = [5, 0, 0], sizes = [1, 8, 512], strides = [1, 1, 1]} : vector<8x8x512xf32> to vector<1x8x512xf32>
    %128 = vector.shape_cast %127 : vector<1x8x512xf32> to vector<8x512xf32>
    %129 = vector.extract_strided_slice %128 {offsets = [0, 256], sizes = [8, 256], strides = [1, 1]} : vector<8x512xf32> to vector<8x256xf32>
    %130 = arith.truncf %104 : vector<8x64xf32> to vector<8x64xbf16>
    %cst_25 = arith.constant dense<0.000000e+00> : vector<8x256xf32>
    %131 = tpu.matmul %130, %15, %cst_25 {dimension_numbers = #tpu.dot_dimension_numbers<[1], [0], [0], [1], [0, 0, 1, 1], [], []>} : vector<8x64xbf16>, vector<64x256xbf16>, vector<8x256xf32> -> vector<8x256xf32>
    %132 = arith.addf %129, %131 : vector<8x256xf32>
    %133 = vector.extract_strided_slice %132 {offsets = [0, 0], sizes = [8, 192], strides = [1, 1]} : vector<8x256xf32> to vector<8x192xf32>
    %134 = arith.negf %133 : vector<8x192xf32>
    %135 = math.exp %134 : vector<8x192xf32>
    %cst_26 = arith.constant 1.000000e+00 : f32
    %136 = vector.broadcast %cst_26 : f32 to vector<8x192xf32>
    %137 = arith.addf %136, %135 : vector<8x192xf32>
    %138 = arith.divf %136, %137 : vector<8x192xf32>
    %139 = vector.extract_strided_slice %138 {offsets = [0, 0], sizes = [8, 64], strides = [1, 1]} : vector<8x192xf32> to vector<8x64xf32>
    %140 = vector.extract_strided_slice %138 {offsets = [0, 64], sizes = [8, 64], strides = [1, 1]} : vector<8x192xf32> to vector<8x64xf32>
    %141 = vector.extract_strided_slice %138 {offsets = [0, 128], sizes = [8, 64], strides = [1, 1]} : vector<8x192xf32> to vector<8x64xf32>
    %142 = vector.extract_strided_slice %132 {offsets = [0, 192], sizes = [8, 64], strides = [1, 1]} : vector<8x256xf32> to vector<8x64xf32>
    %143 = math.tanh %142 : vector<8x64xf32>
    %144 = arith.mulf %140, %102 : vector<8x64xf32>
    %145 = arith.mulf %139, %143 : vector<8x64xf32>
    %146 = arith.addf %144, %145 : vector<8x64xf32>
    %147 = math.tanh %146 : vector<8x64xf32>
    %148 = arith.mulf %141, %147 : vector<8x64xf32>
    %149 = vector.extract_strided_slice %13 {offsets = [3, 0, 0], sizes = [1, 8, 512], strides = [1, 1, 1]} : vector<8x8x512xf32> to vector<1x8x512xf32>
    %150 = vector.shape_cast %149 : vector<1x8x512xf32> to vector<8x512xf32>
    %151 = vector.extract_strided_slice %150 {offsets = [0, 0], sizes = [8, 256], strides = [1, 1]} : vector<8x512xf32> to vector<8x256xf32>
    %152 = arith.truncf %126 : vector<8x64xf32> to vector<8x64xbf16>
    %cst_27 = arith.constant dense<0.000000e+00> : vector<8x256xf32>
    %153 = tpu.matmul %152, %14, %cst_27 {dimension_numbers = #tpu.dot_dimension_numbers<[1], [0], [0], [1], [0, 0, 1, 1], [], []>} : vector<8x64xbf16>, vector<64x256xbf16>, vector<8x256xf32> -> vector<8x256xf32>
    %154 = arith.addf %151, %153 : vector<8x256xf32>
    %155 = vector.extract_strided_slice %154 {offsets = [0, 0], sizes = [8, 192], strides = [1, 1]} : vector<8x256xf32> to vector<8x192xf32>
    %156 = arith.negf %155 : vector<8x192xf32>
    %157 = math.exp %156 : vector<8x192xf32>
    %cst_28 = arith.constant 1.000000e+00 : f32
    %158 = vector.broadcast %cst_28 : f32 to vector<8x192xf32>
    %159 = arith.addf %158, %157 : vector<8x192xf32>
    %160 = arith.divf %158, %159 : vector<8x192xf32>
    %161 = vector.extract_strided_slice %160 {offsets = [0, 0], sizes = [8, 64], strides = [1, 1]} : vector<8x192xf32> to vector<8x64xf32>
    %162 = vector.extract_strided_slice %160 {offsets = [0, 64], sizes = [8, 64], strides = [1, 1]} : vector<8x192xf32> to vector<8x64xf32>
    %163 = vector.extract_strided_slice %160 {offsets = [0, 128], sizes = [8, 64], strides = [1, 1]} : vector<8x192xf32> to vector<8x64xf32>
    %164 = vector.extract_strided_slice %154 {offsets = [0, 192], sizes = [8, 64], strides = [1, 1]} : vector<8x256xf32> to vector<8x64xf32>
    %165 = math.tanh %164 : vector<8x64xf32>
    %166 = arith.mulf %162, %124 : vector<8x64xf32>
    %167 = arith.mulf %161, %165 : vector<8x64xf32>
    %168 = arith.addf %166, %167 : vector<8x64xf32>
    %169 = math.tanh %168 : vector<8x64xf32>
    %170 = arith.mulf %163, %169 : vector<8x64xf32>
    %171 = vector.extract_strided_slice %13 {offsets = [4, 0, 0], sizes = [1, 8, 512], strides = [1, 1, 1]} : vector<8x8x512xf32> to vector<1x8x512xf32>
    %172 = vector.shape_cast %171 : vector<1x8x512xf32> to vector<8x512xf32>
    %173 = vector.extract_strided_slice %172 {offsets = [0, 256], sizes = [8, 256], strides = [1, 1]} : vector<8x512xf32> to vector<8x256xf32>
    %174 = arith.truncf %148 : vector<8x64xf32> to vector<8x64xbf16>
    %cst_29 = arith.constant dense<0.000000e+00> : vector<8x256xf32>
    %175 = tpu.matmul %174, %15, %cst_29 {dimension_numbers = #tpu.dot_dimension_numbers<[1], [0], [0], [1], [0, 0, 1, 1], [], []>} : vector<8x64xbf16>, vector<64x256xbf16>, vector<8x256xf32> -> vector<8x256xf32>
    %176 = arith.addf %173, %175 : vector<8x256xf32>
    %177 = vector.extract_strided_slice %176 {offsets = [0, 0], sizes = [8, 192], strides = [1, 1]} : vector<8x256xf32> to vector<8x192xf32>
    %178 = arith.negf %177 : vector<8x192xf32>
    %179 = math.exp %178 : vector<8x192xf32>
    %cst_30 = arith.constant 1.000000e+00 : f32
    %180 = vector.broadcast %cst_30 : f32 to vector<8x192xf32>
    %181 = arith.addf %180, %179 : vector<8x192xf32>
    %182 = arith.divf %180, %181 : vector<8x192xf32>
    %183 = vector.extract_strided_slice %182 {offsets = [0, 0], sizes = [8, 64], strides = [1, 1]} : vector<8x192xf32> to vector<8x64xf32>
    %184 = vector.extract_strided_slice %182 {offsets = [0, 64], sizes = [8, 64], strides = [1, 1]} : vector<8x192xf32> to vector<8x64xf32>
    %185 = vector.extract_strided_slice %182 {offsets = [0, 128], sizes = [8, 64], strides = [1, 1]} : vector<8x192xf32> to vector<8x64xf32>
    %186 = vector.extract_strided_slice %176 {offsets = [0, 192], sizes = [8, 64], strides = [1, 1]} : vector<8x256xf32> to vector<8x64xf32>
    %187 = math.tanh %186 : vector<8x64xf32>
    %188 = arith.mulf %184, %146 : vector<8x64xf32>
    %189 = arith.mulf %183, %187 : vector<8x64xf32>
    %190 = arith.addf %188, %189 : vector<8x64xf32>
    %191 = math.tanh %190 : vector<8x64xf32>
    %192 = arith.mulf %185, %191 : vector<8x64xf32>
    %193 = vector.extract_strided_slice %13 {offsets = [4, 0, 0], sizes = [1, 8, 512], strides = [1, 1, 1]} : vector<8x8x512xf32> to vector<1x8x512xf32>
    %194 = vector.shape_cast %193 : vector<1x8x512xf32> to vector<8x512xf32>
    %195 = vector.extract_strided_slice %194 {offsets = [0, 0], sizes = [8, 256], strides = [1, 1]} : vector<8x512xf32> to vector<8x256xf32>
    %196 = arith.truncf %170 : vector<8x64xf32> to vector<8x64xbf16>
    %cst_31 = arith.constant dense<0.000000e+00> : vector<8x256xf32>
    %197 = tpu.matmul %196, %14, %cst_31 {dimension_numbers = #tpu.dot_dimension_numbers<[1], [0], [0], [1], [0, 0, 1, 1], [], []>} : vector<8x64xbf16>, vector<64x256xbf16>, vector<8x256xf32> -> vector<8x256xf32>
    %198 = arith.addf %195, %197 : vector<8x256xf32>
    %199 = vector.extract_strided_slice %198 {offsets = [0, 0], sizes = [8, 192], strides = [1, 1]} : vector<8x256xf32> to vector<8x192xf32>
    %200 = arith.negf %199 : vector<8x192xf32>
    %201 = math.exp %200 : vector<8x192xf32>
    %cst_32 = arith.constant 1.000000e+00 : f32
    %202 = vector.broadcast %cst_32 : f32 to vector<8x192xf32>
    %203 = arith.addf %202, %201 : vector<8x192xf32>
    %204 = arith.divf %202, %203 : vector<8x192xf32>
    %205 = vector.extract_strided_slice %204 {offsets = [0, 0], sizes = [8, 64], strides = [1, 1]} : vector<8x192xf32> to vector<8x64xf32>
    %206 = vector.extract_strided_slice %204 {offsets = [0, 64], sizes = [8, 64], strides = [1, 1]} : vector<8x192xf32> to vector<8x64xf32>
    %207 = vector.extract_strided_slice %204 {offsets = [0, 128], sizes = [8, 64], strides = [1, 1]} : vector<8x192xf32> to vector<8x64xf32>
    %208 = vector.extract_strided_slice %198 {offsets = [0, 192], sizes = [8, 64], strides = [1, 1]} : vector<8x256xf32> to vector<8x64xf32>
    %209 = math.tanh %208 : vector<8x64xf32>
    %210 = arith.mulf %206, %168 : vector<8x64xf32>
    %211 = arith.mulf %205, %209 : vector<8x64xf32>
    %212 = arith.addf %210, %211 : vector<8x64xf32>
    %213 = math.tanh %212 : vector<8x64xf32>
    %214 = arith.mulf %207, %213 : vector<8x64xf32>
    %215 = vector.extract_strided_slice %13 {offsets = [3, 0, 0], sizes = [1, 8, 512], strides = [1, 1, 1]} : vector<8x8x512xf32> to vector<1x8x512xf32>
    %216 = vector.shape_cast %215 : vector<1x8x512xf32> to vector<8x512xf32>
    %217 = vector.extract_strided_slice %216 {offsets = [0, 256], sizes = [8, 256], strides = [1, 1]} : vector<8x512xf32> to vector<8x256xf32>
    %218 = arith.truncf %192 : vector<8x64xf32> to vector<8x64xbf16>
    %cst_33 = arith.constant dense<0.000000e+00> : vector<8x256xf32>
    %219 = tpu.matmul %218, %15, %cst_33 {dimension_numbers = #tpu.dot_dimension_numbers<[1], [0], [0], [1], [0, 0, 1, 1], [], []>} : vector<8x64xbf16>, vector<64x256xbf16>, vector<8x256xf32> -> vector<8x256xf32>
    %220 = arith.addf %217, %219 : vector<8x256xf32>
    %221 = vector.extract_strided_slice %220 {offsets = [0, 0], sizes = [8, 192], strides = [1, 1]} : vector<8x256xf32> to vector<8x192xf32>
    %222 = arith.negf %221 : vector<8x192xf32>
    %223 = math.exp %222 : vector<8x192xf32>
    %cst_34 = arith.constant 1.000000e+00 : f32
    %224 = vector.broadcast %cst_34 : f32 to vector<8x192xf32>
    %225 = arith.addf %224, %223 : vector<8x192xf32>
    %226 = arith.divf %224, %225 : vector<8x192xf32>
    %227 = vector.extract_strided_slice %226 {offsets = [0, 0], sizes = [8, 64], strides = [1, 1]} : vector<8x192xf32> to vector<8x64xf32>
    %228 = vector.extract_strided_slice %226 {offsets = [0, 64], sizes = [8, 64], strides = [1, 1]} : vector<8x192xf32> to vector<8x64xf32>
    %229 = vector.extract_strided_slice %226 {offsets = [0, 128], sizes = [8, 64], strides = [1, 1]} : vector<8x192xf32> to vector<8x64xf32>
    %230 = vector.extract_strided_slice %220 {offsets = [0, 192], sizes = [8, 64], strides = [1, 1]} : vector<8x256xf32> to vector<8x64xf32>
    %231 = math.tanh %230 : vector<8x64xf32>
    %232 = arith.mulf %228, %190 : vector<8x64xf32>
    %233 = arith.mulf %227, %231 : vector<8x64xf32>
    %234 = arith.addf %232, %233 : vector<8x64xf32>
    %235 = math.tanh %234 : vector<8x64xf32>
    %236 = arith.mulf %229, %235 : vector<8x64xf32>
    %237 = vector.extract_strided_slice %13 {offsets = [5, 0, 0], sizes = [1, 8, 512], strides = [1, 1, 1]} : vector<8x8x512xf32> to vector<1x8x512xf32>
    %238 = vector.shape_cast %237 : vector<1x8x512xf32> to vector<8x512xf32>
    %239 = vector.extract_strided_slice %238 {offsets = [0, 0], sizes = [8, 256], strides = [1, 1]} : vector<8x512xf32> to vector<8x256xf32>
    %240 = arith.truncf %214 : vector<8x64xf32> to vector<8x64xbf16>
    %cst_35 = arith.constant dense<0.000000e+00> : vector<8x256xf32>
    %241 = tpu.matmul %240, %14, %cst_35 {dimension_numbers = #tpu.dot_dimension_numbers<[1], [0], [0], [1], [0, 0, 1, 1], [], []>} : vector<8x64xbf16>, vector<64x256xbf16>, vector<8x256xf32> -> vector<8x256xf32>
    %242 = arith.addf %239, %241 : vector<8x256xf32>
    %243 = vector.extract_strided_slice %242 {offsets = [0, 0], sizes = [8, 192], strides = [1, 1]} : vector<8x256xf32> to vector<8x192xf32>
    %244 = arith.negf %243 : vector<8x192xf32>
    %245 = math.exp %244 : vector<8x192xf32>
    %cst_36 = arith.constant 1.000000e+00 : f32
    %246 = vector.broadcast %cst_36 : f32 to vector<8x192xf32>
    %247 = arith.addf %246, %245 : vector<8x192xf32>
    %248 = arith.divf %246, %247 : vector<8x192xf32>
    %249 = vector.extract_strided_slice %248 {offsets = [0, 0], sizes = [8, 64], strides = [1, 1]} : vector<8x192xf32> to vector<8x64xf32>
    %250 = vector.extract_strided_slice %248 {offsets = [0, 64], sizes = [8, 64], strides = [1, 1]} : vector<8x192xf32> to vector<8x64xf32>
    %251 = vector.extract_strided_slice %248 {offsets = [0, 128], sizes = [8, 64], strides = [1, 1]} : vector<8x192xf32> to vector<8x64xf32>
    %252 = vector.extract_strided_slice %242 {offsets = [0, 192], sizes = [8, 64], strides = [1, 1]} : vector<8x256xf32> to vector<8x64xf32>
    %253 = math.tanh %252 : vector<8x64xf32>
    %254 = arith.mulf %250, %212 : vector<8x64xf32>
    %255 = arith.mulf %249, %253 : vector<8x64xf32>
    %256 = arith.addf %254, %255 : vector<8x64xf32>
    %257 = math.tanh %256 : vector<8x64xf32>
    %258 = arith.mulf %251, %257 : vector<8x64xf32>
    %259 = vector.extract_strided_slice %13 {offsets = [2, 0, 0], sizes = [1, 8, 512], strides = [1, 1, 1]} : vector<8x8x512xf32> to vector<1x8x512xf32>
    %260 = vector.shape_cast %259 : vector<1x8x512xf32> to vector<8x512xf32>
    %261 = vector.extract_strided_slice %260 {offsets = [0, 256], sizes = [8, 256], strides = [1, 1]} : vector<8x512xf32> to vector<8x256xf32>
    %262 = arith.truncf %236 : vector<8x64xf32> to vector<8x64xbf16>
    %cst_37 = arith.constant dense<0.000000e+00> : vector<8x256xf32>
    %263 = tpu.matmul %262, %15, %cst_37 {dimension_numbers = #tpu.dot_dimension_numbers<[1], [0], [0], [1], [0, 0, 1, 1], [], []>} : vector<8x64xbf16>, vector<64x256xbf16>, vector<8x256xf32> -> vector<8x256xf32>
    %264 = arith.addf %261, %263 : vector<8x256xf32>
    %265 = vector.extract_strided_slice %264 {offsets = [0, 0], sizes = [8, 192], strides = [1, 1]} : vector<8x256xf32> to vector<8x192xf32>
    %266 = arith.negf %265 : vector<8x192xf32>
    %267 = math.exp %266 : vector<8x192xf32>
    %cst_38 = arith.constant 1.000000e+00 : f32
    %268 = vector.broadcast %cst_38 : f32 to vector<8x192xf32>
    %269 = arith.addf %268, %267 : vector<8x192xf32>
    %270 = arith.divf %268, %269 : vector<8x192xf32>
    %271 = vector.extract_strided_slice %270 {offsets = [0, 0], sizes = [8, 64], strides = [1, 1]} : vector<8x192xf32> to vector<8x64xf32>
    %272 = vector.extract_strided_slice %270 {offsets = [0, 64], sizes = [8, 64], strides = [1, 1]} : vector<8x192xf32> to vector<8x64xf32>
    %273 = vector.extract_strided_slice %270 {offsets = [0, 128], sizes = [8, 64], strides = [1, 1]} : vector<8x192xf32> to vector<8x64xf32>
    %274 = vector.extract_strided_slice %264 {offsets = [0, 192], sizes = [8, 64], strides = [1, 1]} : vector<8x256xf32> to vector<8x64xf32>
    %275 = math.tanh %274 : vector<8x64xf32>
    %276 = arith.mulf %272, %234 : vector<8x64xf32>
    %277 = arith.mulf %271, %275 : vector<8x64xf32>
    %278 = arith.addf %276, %277 : vector<8x64xf32>
    %279 = math.tanh %278 : vector<8x64xf32>
    %280 = arith.mulf %273, %279 : vector<8x64xf32>
    %281 = vector.extract_strided_slice %13 {offsets = [6, 0, 0], sizes = [1, 8, 512], strides = [1, 1, 1]} : vector<8x8x512xf32> to vector<1x8x512xf32>
    %282 = vector.shape_cast %281 : vector<1x8x512xf32> to vector<8x512xf32>
    %283 = vector.extract_strided_slice %282 {offsets = [0, 0], sizes = [8, 256], strides = [1, 1]} : vector<8x512xf32> to vector<8x256xf32>
    %284 = arith.truncf %258 : vector<8x64xf32> to vector<8x64xbf16>
    %cst_39 = arith.constant dense<0.000000e+00> : vector<8x256xf32>
    %285 = tpu.matmul %284, %14, %cst_39 {dimension_numbers = #tpu.dot_dimension_numbers<[1], [0], [0], [1], [0, 0, 1, 1], [], []>} : vector<8x64xbf16>, vector<64x256xbf16>, vector<8x256xf32> -> vector<8x256xf32>
    %286 = arith.addf %283, %285 : vector<8x256xf32>
    %287 = vector.extract_strided_slice %286 {offsets = [0, 0], sizes = [8, 192], strides = [1, 1]} : vector<8x256xf32> to vector<8x192xf32>
    %288 = arith.negf %287 : vector<8x192xf32>
    %289 = math.exp %288 : vector<8x192xf32>
    %cst_40 = arith.constant 1.000000e+00 : f32
    %290 = vector.broadcast %cst_40 : f32 to vector<8x192xf32>
    %291 = arith.addf %290, %289 : vector<8x192xf32>
    %292 = arith.divf %290, %291 : vector<8x192xf32>
    %293 = vector.extract_strided_slice %292 {offsets = [0, 0], sizes = [8, 64], strides = [1, 1]} : vector<8x192xf32> to vector<8x64xf32>
    %294 = vector.extract_strided_slice %292 {offsets = [0, 64], sizes = [8, 64], strides = [1, 1]} : vector<8x192xf32> to vector<8x64xf32>
    %295 = vector.extract_strided_slice %292 {offsets = [0, 128], sizes = [8, 64], strides = [1, 1]} : vector<8x192xf32> to vector<8x64xf32>
    %296 = vector.extract_strided_slice %286 {offsets = [0, 192], sizes = [8, 64], strides = [1, 1]} : vector<8x256xf32> to vector<8x64xf32>
    %297 = math.tanh %296 : vector<8x64xf32>
    %298 = arith.mulf %294, %256 : vector<8x64xf32>
    %299 = arith.mulf %293, %297 : vector<8x64xf32>
    %300 = arith.addf %298, %299 : vector<8x64xf32>
    %301 = math.tanh %300 : vector<8x64xf32>
    %302 = arith.mulf %295, %301 : vector<8x64xf32>
    %303 = vector.extract_strided_slice %13 {offsets = [1, 0, 0], sizes = [1, 8, 512], strides = [1, 1, 1]} : vector<8x8x512xf32> to vector<1x8x512xf32>
    %304 = vector.shape_cast %303 : vector<1x8x512xf32> to vector<8x512xf32>
    %305 = vector.extract_strided_slice %304 {offsets = [0, 256], sizes = [8, 256], strides = [1, 1]} : vector<8x512xf32> to vector<8x256xf32>
    %306 = arith.truncf %280 : vector<8x64xf32> to vector<8x64xbf16>
    %cst_41 = arith.constant dense<0.000000e+00> : vector<8x256xf32>
    %307 = tpu.matmul %306, %15, %cst_41 {dimension_numbers = #tpu.dot_dimension_numbers<[1], [0], [0], [1], [0, 0, 1, 1], [], []>} : vector<8x64xbf16>, vector<64x256xbf16>, vector<8x256xf32> -> vector<8x256xf32>
    %308 = arith.addf %305, %307 : vector<8x256xf32>
    %309 = vector.extract_strided_slice %308 {offsets = [0, 0], sizes = [8, 192], strides = [1, 1]} : vector<8x256xf32> to vector<8x192xf32>
    %310 = arith.negf %309 : vector<8x192xf32>
    %311 = math.exp %310 : vector<8x192xf32>
    %cst_42 = arith.constant 1.000000e+00 : f32
    %312 = vector.broadcast %cst_42 : f32 to vector<8x192xf32>
    %313 = arith.addf %312, %311 : vector<8x192xf32>
    %314 = arith.divf %312, %313 : vector<8x192xf32>
    %315 = vector.extract_strided_slice %314 {offsets = [0, 0], sizes = [8, 64], strides = [1, 1]} : vector<8x192xf32> to vector<8x64xf32>
    %316 = vector.extract_strided_slice %314 {offsets = [0, 64], sizes = [8, 64], strides = [1, 1]} : vector<8x192xf32> to vector<8x64xf32>
    %317 = vector.extract_strided_slice %314 {offsets = [0, 128], sizes = [8, 64], strides = [1, 1]} : vector<8x192xf32> to vector<8x64xf32>
    %318 = vector.extract_strided_slice %308 {offsets = [0, 192], sizes = [8, 64], strides = [1, 1]} : vector<8x256xf32> to vector<8x64xf32>
    %319 = math.tanh %318 : vector<8x64xf32>
    %320 = arith.mulf %316, %278 : vector<8x64xf32>
    %321 = arith.mulf %315, %319 : vector<8x64xf32>
    %322 = arith.addf %320, %321 : vector<8x64xf32>
    %323 = math.tanh %322 : vector<8x64xf32>
    %324 = arith.mulf %317, %323 : vector<8x64xf32>
    %325 = vector.extract_strided_slice %13 {offsets = [7, 0, 0], sizes = [1, 8, 512], strides = [1, 1, 1]} : vector<8x8x512xf32> to vector<1x8x512xf32>
    %326 = vector.shape_cast %325 : vector<1x8x512xf32> to vector<8x512xf32>
    %327 = vector.extract_strided_slice %326 {offsets = [0, 0], sizes = [8, 256], strides = [1, 1]} : vector<8x512xf32> to vector<8x256xf32>
    %328 = arith.truncf %302 : vector<8x64xf32> to vector<8x64xbf16>
    %cst_43 = arith.constant dense<0.000000e+00> : vector<8x256xf32>
    %329 = tpu.matmul %328, %14, %cst_43 {dimension_numbers = #tpu.dot_dimension_numbers<[1], [0], [0], [1], [0, 0, 1, 1], [], []>} : vector<8x64xbf16>, vector<64x256xbf16>, vector<8x256xf32> -> vector<8x256xf32>
    %330 = arith.addf %327, %329 : vector<8x256xf32>
    %331 = vector.extract_strided_slice %330 {offsets = [0, 0], sizes = [8, 192], strides = [1, 1]} : vector<8x256xf32> to vector<8x192xf32>
    %332 = arith.negf %331 : vector<8x192xf32>
    %333 = math.exp %332 : vector<8x192xf32>
    %cst_44 = arith.constant 1.000000e+00 : f32
    %334 = vector.broadcast %cst_44 : f32 to vector<8x192xf32>
    %335 = arith.addf %334, %333 : vector<8x192xf32>
    %336 = arith.divf %334, %335 : vector<8x192xf32>
    %337 = vector.extract_strided_slice %336 {offsets = [0, 0], sizes = [8, 64], strides = [1, 1]} : vector<8x192xf32> to vector<8x64xf32>
    %338 = vector.extract_strided_slice %336 {offsets = [0, 64], sizes = [8, 64], strides = [1, 1]} : vector<8x192xf32> to vector<8x64xf32>
    %339 = vector.extract_strided_slice %336 {offsets = [0, 128], sizes = [8, 64], strides = [1, 1]} : vector<8x192xf32> to vector<8x64xf32>
    %340 = vector.extract_strided_slice %330 {offsets = [0, 192], sizes = [8, 64], strides = [1, 1]} : vector<8x256xf32> to vector<8x64xf32>
    %341 = math.tanh %340 : vector<8x64xf32>
    %342 = arith.mulf %338, %300 : vector<8x64xf32>
    %343 = arith.mulf %337, %341 : vector<8x64xf32>
    %344 = arith.addf %342, %343 : vector<8x64xf32>
    %345 = math.tanh %344 : vector<8x64xf32>
    %346 = arith.mulf %339, %345 : vector<8x64xf32>
    %347 = vector.extract_strided_slice %13 {offsets = [0, 0, 0], sizes = [1, 8, 512], strides = [1, 1, 1]} : vector<8x8x512xf32> to vector<1x8x512xf32>
    %348 = vector.shape_cast %347 : vector<1x8x512xf32> to vector<8x512xf32>
    %349 = vector.extract_strided_slice %348 {offsets = [0, 256], sizes = [8, 256], strides = [1, 1]} : vector<8x512xf32> to vector<8x256xf32>
    %350 = arith.truncf %324 : vector<8x64xf32> to vector<8x64xbf16>
    %cst_45 = arith.constant dense<0.000000e+00> : vector<8x256xf32>
    %351 = tpu.matmul %350, %15, %cst_45 {dimension_numbers = #tpu.dot_dimension_numbers<[1], [0], [0], [1], [0, 0, 1, 1], [], []>} : vector<8x64xbf16>, vector<64x256xbf16>, vector<8x256xf32> -> vector<8x256xf32>
    %352 = arith.addf %349, %351 : vector<8x256xf32>
    %353 = vector.extract_strided_slice %352 {offsets = [0, 0], sizes = [8, 192], strides = [1, 1]} : vector<8x256xf32> to vector<8x192xf32>
    %354 = arith.negf %353 : vector<8x192xf32>
    %355 = math.exp %354 : vector<8x192xf32>
    %cst_46 = arith.constant 1.000000e+00 : f32
    %356 = vector.broadcast %cst_46 : f32 to vector<8x192xf32>
    %357 = arith.addf %356, %355 : vector<8x192xf32>
    %358 = arith.divf %356, %357 : vector<8x192xf32>
    %359 = vector.extract_strided_slice %358 {offsets = [0, 0], sizes = [8, 64], strides = [1, 1]} : vector<8x192xf32> to vector<8x64xf32>
    %360 = vector.extract_strided_slice %358 {offsets = [0, 64], sizes = [8, 64], strides = [1, 1]} : vector<8x192xf32> to vector<8x64xf32>
    %361 = vector.extract_strided_slice %358 {offsets = [0, 128], sizes = [8, 64], strides = [1, 1]} : vector<8x192xf32> to vector<8x64xf32>
    %362 = vector.extract_strided_slice %352 {offsets = [0, 192], sizes = [8, 64], strides = [1, 1]} : vector<8x256xf32> to vector<8x64xf32>
    %363 = math.tanh %362 : vector<8x64xf32>
    %364 = arith.mulf %360, %322 : vector<8x64xf32>
    %365 = arith.mulf %359, %363 : vector<8x64xf32>
    %366 = arith.addf %364, %365 : vector<8x64xf32>
    %367 = math.tanh %366 : vector<8x64xf32>
    %368 = arith.mulf %361, %367 : vector<8x64xf32>
    %c0_47 = arith.constant 0 : index
    %c0_48 = arith.constant 0 : index
    %369 = vector.load %arg7[%c0_47, %c0_48] : memref<1x128xf32, #tpu.memory_space<vmem>>, vector<1x128xf32>
    %c0_49 = arith.constant 0 : index
    %c0_50 = arith.constant 0 : index
    %370 = vector.load %arg8[%c0_49, %c0_50] : memref<1x1xf32, #tpu.memory_space<vmem>>, vector<1x1xf32>
    %371 = tpu.concatenate %38, %368 in 1 : vector<8x64xf32>, vector<8x64xf32> -> vector<8x128xf32>
    %372 = tpu.concatenate %82, %324 in 1 : vector<8x64xf32>, vector<8x64xf32> -> vector<8x128xf32>
    %373 = tpu.concatenate %126, %280 in 1 : vector<8x64xf32>, vector<8x64xf32> -> vector<8x128xf32>
    %374 = tpu.concatenate %170, %236 in 1 : vector<8x64xf32>, vector<8x64xf32> -> vector<8x128xf32>
    %375 = tpu.concatenate %214, %192 in 1 : vector<8x64xf32>, vector<8x64xf32> -> vector<8x128xf32>
    %376 = tpu.concatenate %258, %148 in 1 : vector<8x64xf32>, vector<8x64xf32> -> vector<8x128xf32>
    %377 = tpu.concatenate %302, %104 in 1 : vector<8x64xf32>, vector<8x64xf32> -> vector<8x128xf32>
    %378 = tpu.concatenate %346, %60 in 1 : vector<8x64xf32>, vector<8x64xf32> -> vector<8x128xf32>
    %379 = vector.broadcast %369 : vector<1x128xf32> to vector<8x128xf32>
    %380 = arith.mulf %371, %379 : vector<8x128xf32>
    %cst_51 = arith.constant dense<0.000000e+00> : vector<8xf32>
    %381 = vector.multi_reduction <add>, %380, %cst_51 [1] : vector<8x128xf32> to vector<8xf32>
    %382 = vector.shape_cast %381 : vector<8xf32> to vector<8x1xf32>
    %383 = vector.broadcast %370 : vector<1x1xf32> to vector<8x1xf32>
    %384 = arith.addf %382, %383 : vector<8x1xf32>
    %385 = vector.extract_strided_slice %0 {offsets = [0, 0, 0], sizes = [1, 8, 1], strides = [1, 1, 1]} : vector<8x8x1xf32> to vector<1x8x1xf32>
    %386 = vector.shape_cast %385 : vector<1x8x1xf32> to vector<8x1xf32>
    %cst_52 = arith.constant 5.000000e-01 : f32
    %387 = vector.broadcast %cst_52 : f32 to vector<8x1xf32>
    %388 = arith.cmpf ogt, %386, %387 : vector<8x1xf32>
    %cst_53 = arith.constant -1.000000e+05 : f32
    %389 = vector.broadcast %cst_53 : f32 to vector<8x1xf32>
    %390 = arith.select %388, %389, %384 : vector<8x1xi1>, vector<8x1xf32>
    %391 = vector.broadcast %369 : vector<1x128xf32> to vector<8x128xf32>
    %392 = arith.mulf %372, %391 : vector<8x128xf32>
    %cst_54 = arith.constant dense<0.000000e+00> : vector<8xf32>
    %393 = vector.multi_reduction <add>, %392, %cst_54 [1] : vector<8x128xf32> to vector<8xf32>
    %394 = vector.shape_cast %393 : vector<8xf32> to vector<8x1xf32>
    %395 = vector.broadcast %370 : vector<1x1xf32> to vector<8x1xf32>
    %396 = arith.addf %394, %395 : vector<8x1xf32>
    %397 = vector.extract_strided_slice %0 {offsets = [1, 0, 0], sizes = [1, 8, 1], strides = [1, 1, 1]} : vector<8x8x1xf32> to vector<1x8x1xf32>
    %398 = vector.shape_cast %397 : vector<1x8x1xf32> to vector<8x1xf32>
    %cst_55 = arith.constant 5.000000e-01 : f32
    %399 = vector.broadcast %cst_55 : f32 to vector<8x1xf32>
    %400 = arith.cmpf ogt, %398, %399 : vector<8x1xf32>
    %cst_56 = arith.constant -1.000000e+05 : f32
    %401 = vector.broadcast %cst_56 : f32 to vector<8x1xf32>
    %402 = arith.select %400, %401, %396 : vector<8x1xi1>, vector<8x1xf32>
    %403 = vector.broadcast %369 : vector<1x128xf32> to vector<8x128xf32>
    %404 = arith.mulf %373, %403 : vector<8x128xf32>
    %cst_57 = arith.constant dense<0.000000e+00> : vector<8xf32>
    %405 = vector.multi_reduction <add>, %404, %cst_57 [1] : vector<8x128xf32> to vector<8xf32>
    %406 = vector.shape_cast %405 : vector<8xf32> to vector<8x1xf32>
    %407 = vector.broadcast %370 : vector<1x1xf32> to vector<8x1xf32>
    %408 = arith.addf %406, %407 : vector<8x1xf32>
    %409 = vector.extract_strided_slice %0 {offsets = [2, 0, 0], sizes = [1, 8, 1], strides = [1, 1, 1]} : vector<8x8x1xf32> to vector<1x8x1xf32>
    %410 = vector.shape_cast %409 : vector<1x8x1xf32> to vector<8x1xf32>
    %cst_58 = arith.constant 5.000000e-01 : f32
    %411 = vector.broadcast %cst_58 : f32 to vector<8x1xf32>
    %412 = arith.cmpf ogt, %410, %411 : vector<8x1xf32>
    %cst_59 = arith.constant -1.000000e+05 : f32
    %413 = vector.broadcast %cst_59 : f32 to vector<8x1xf32>
    %414 = arith.select %412, %413, %408 : vector<8x1xi1>, vector<8x1xf32>
    %415 = vector.broadcast %369 : vector<1x128xf32> to vector<8x128xf32>
    %416 = arith.mulf %374, %415 : vector<8x128xf32>
    %cst_60 = arith.constant dense<0.000000e+00> : vector<8xf32>
    %417 = vector.multi_reduction <add>, %416, %cst_60 [1] : vector<8x128xf32> to vector<8xf32>
    %418 = vector.shape_cast %417 : vector<8xf32> to vector<8x1xf32>
    %419 = vector.broadcast %370 : vector<1x1xf32> to vector<8x1xf32>
    %420 = arith.addf %418, %419 : vector<8x1xf32>
    %421 = vector.extract_strided_slice %0 {offsets = [3, 0, 0], sizes = [1, 8, 1], strides = [1, 1, 1]} : vector<8x8x1xf32> to vector<1x8x1xf32>
    %422 = vector.shape_cast %421 : vector<1x8x1xf32> to vector<8x1xf32>
    %cst_61 = arith.constant 5.000000e-01 : f32
    %423 = vector.broadcast %cst_61 : f32 to vector<8x1xf32>
    %424 = arith.cmpf ogt, %422, %423 : vector<8x1xf32>
    %cst_62 = arith.constant -1.000000e+05 : f32
    %425 = vector.broadcast %cst_62 : f32 to vector<8x1xf32>
    %426 = arith.select %424, %425, %420 : vector<8x1xi1>, vector<8x1xf32>
    %427 = vector.broadcast %369 : vector<1x128xf32> to vector<8x128xf32>
    %428 = arith.mulf %375, %427 : vector<8x128xf32>
    %cst_63 = arith.constant dense<0.000000e+00> : vector<8xf32>
    %429 = vector.multi_reduction <add>, %428, %cst_63 [1] : vector<8x128xf32> to vector<8xf32>
    %430 = vector.shape_cast %429 : vector<8xf32> to vector<8x1xf32>
    %431 = vector.broadcast %370 : vector<1x1xf32> to vector<8x1xf32>
    %432 = arith.addf %430, %431 : vector<8x1xf32>
    %433 = vector.extract_strided_slice %0 {offsets = [4, 0, 0], sizes = [1, 8, 1], strides = [1, 1, 1]} : vector<8x8x1xf32> to vector<1x8x1xf32>
    %434 = vector.shape_cast %433 : vector<1x8x1xf32> to vector<8x1xf32>
    %cst_64 = arith.constant 5.000000e-01 : f32
    %435 = vector.broadcast %cst_64 : f32 to vector<8x1xf32>
    %436 = arith.cmpf ogt, %434, %435 : vector<8x1xf32>
    %cst_65 = arith.constant -1.000000e+05 : f32
    %437 = vector.broadcast %cst_65 : f32 to vector<8x1xf32>
    %438 = arith.select %436, %437, %432 : vector<8x1xi1>, vector<8x1xf32>
    %439 = vector.broadcast %369 : vector<1x128xf32> to vector<8x128xf32>
    %440 = arith.mulf %376, %439 : vector<8x128xf32>
    %cst_66 = arith.constant dense<0.000000e+00> : vector<8xf32>
    %441 = vector.multi_reduction <add>, %440, %cst_66 [1] : vector<8x128xf32> to vector<8xf32>
    %442 = vector.shape_cast %441 : vector<8xf32> to vector<8x1xf32>
    %443 = vector.broadcast %370 : vector<1x1xf32> to vector<8x1xf32>
    %444 = arith.addf %442, %443 : vector<8x1xf32>
    %445 = vector.extract_strided_slice %0 {offsets = [5, 0, 0], sizes = [1, 8, 1], strides = [1, 1, 1]} : vector<8x8x1xf32> to vector<1x8x1xf32>
    %446 = vector.shape_cast %445 : vector<1x8x1xf32> to vector<8x1xf32>
    %cst_67 = arith.constant 5.000000e-01 : f32
    %447 = vector.broadcast %cst_67 : f32 to vector<8x1xf32>
    %448 = arith.cmpf ogt, %446, %447 : vector<8x1xf32>
    %cst_68 = arith.constant -1.000000e+05 : f32
    %449 = vector.broadcast %cst_68 : f32 to vector<8x1xf32>
    %450 = arith.select %448, %449, %444 : vector<8x1xi1>, vector<8x1xf32>
    %451 = vector.broadcast %369 : vector<1x128xf32> to vector<8x128xf32>
    %452 = arith.mulf %377, %451 : vector<8x128xf32>
    %cst_69 = arith.constant dense<0.000000e+00> : vector<8xf32>
    %453 = vector.multi_reduction <add>, %452, %cst_69 [1] : vector<8x128xf32> to vector<8xf32>
    %454 = vector.shape_cast %453 : vector<8xf32> to vector<8x1xf32>
    %455 = vector.broadcast %370 : vector<1x1xf32> to vector<8x1xf32>
    %456 = arith.addf %454, %455 : vector<8x1xf32>
    %457 = vector.extract_strided_slice %0 {offsets = [6, 0, 0], sizes = [1, 8, 1], strides = [1, 1, 1]} : vector<8x8x1xf32> to vector<1x8x1xf32>
    %458 = vector.shape_cast %457 : vector<1x8x1xf32> to vector<8x1xf32>
    %cst_70 = arith.constant 5.000000e-01 : f32
    %459 = vector.broadcast %cst_70 : f32 to vector<8x1xf32>
    %460 = arith.cmpf ogt, %458, %459 : vector<8x1xf32>
    %cst_71 = arith.constant -1.000000e+05 : f32
    %461 = vector.broadcast %cst_71 : f32 to vector<8x1xf32>
    %462 = arith.select %460, %461, %456 : vector<8x1xi1>, vector<8x1xf32>
    %463 = vector.broadcast %369 : vector<1x128xf32> to vector<8x128xf32>
    %464 = arith.mulf %378, %463 : vector<8x128xf32>
    %cst_72 = arith.constant dense<0.000000e+00> : vector<8xf32>
    %465 = vector.multi_reduction <add>, %464, %cst_72 [1] : vector<8x128xf32> to vector<8xf32>
    %466 = vector.shape_cast %465 : vector<8xf32> to vector<8x1xf32>
    %467 = vector.broadcast %370 : vector<1x1xf32> to vector<8x1xf32>
    %468 = arith.addf %466, %467 : vector<8x1xf32>
    %469 = vector.extract_strided_slice %0 {offsets = [7, 0, 0], sizes = [1, 8, 1], strides = [1, 1, 1]} : vector<8x8x1xf32> to vector<1x8x1xf32>
    %470 = vector.shape_cast %469 : vector<1x8x1xf32> to vector<8x1xf32>
    %cst_73 = arith.constant 5.000000e-01 : f32
    %471 = vector.broadcast %cst_73 : f32 to vector<8x1xf32>
    %472 = arith.cmpf ogt, %470, %471 : vector<8x1xf32>
    %cst_74 = arith.constant -1.000000e+05 : f32
    %473 = vector.broadcast %cst_74 : f32 to vector<8x1xf32>
    %474 = arith.select %472, %473, %468 : vector<8x1xi1>, vector<8x1xf32>
    %475 = arith.maximumf %390, %402 : vector<8x1xf32>
    %476 = arith.maximumf %475, %414 : vector<8x1xf32>
    %477 = arith.maximumf %476, %426 : vector<8x1xf32>
    %478 = arith.maximumf %477, %438 : vector<8x1xf32>
    %479 = arith.maximumf %478, %450 : vector<8x1xf32>
    %480 = arith.maximumf %479, %462 : vector<8x1xf32>
    %481 = arith.maximumf %480, %474 : vector<8x1xf32>
    %482 = arith.subf %390, %481 : vector<8x1xf32>
    %483 = math.exp %482 : vector<8x1xf32>
    %484 = arith.subf %402, %481 : vector<8x1xf32>
    %485 = math.exp %484 : vector<8x1xf32>
    %486 = arith.subf %414, %481 : vector<8x1xf32>
    %487 = math.exp %486 : vector<8x1xf32>
    %488 = arith.subf %426, %481 : vector<8x1xf32>
    %489 = math.exp %488 : vector<8x1xf32>
    %490 = arith.subf %438, %481 : vector<8x1xf32>
    %491 = math.exp %490 : vector<8x1xf32>
    %492 = arith.subf %450, %481 : vector<8x1xf32>
    %493 = math.exp %492 : vector<8x1xf32>
    %494 = arith.subf %462, %481 : vector<8x1xf32>
    %495 = math.exp %494 : vector<8x1xf32>
    %496 = arith.subf %474, %481 : vector<8x1xf32>
    %497 = math.exp %496 : vector<8x1xf32>
    %498 = arith.addf %483, %485 : vector<8x1xf32>
    %499 = arith.addf %498, %487 : vector<8x1xf32>
    %500 = arith.addf %499, %489 : vector<8x1xf32>
    %501 = arith.addf %500, %491 : vector<8x1xf32>
    %502 = arith.addf %501, %493 : vector<8x1xf32>
    %503 = arith.addf %502, %495 : vector<8x1xf32>
    %504 = arith.addf %503, %497 : vector<8x1xf32>
    %505 = tpu.reciprocal %504 {approx = true} : vector<8x1xf32> -> vector<8x1xf32>
    %506 = arith.mulf %483, %505 : vector<8x1xf32>
    %507 = vector.broadcast %506 : vector<8x1xf32> to vector<8x128xf32>
    %508 = arith.mulf %507, %371 : vector<8x128xf32>
    %509 = arith.mulf %485, %505 : vector<8x1xf32>
    %510 = vector.broadcast %509 : vector<8x1xf32> to vector<8x128xf32>
    %511 = arith.mulf %510, %372 : vector<8x128xf32>
    %512 = arith.addf %508, %511 : vector<8x128xf32>
    %513 = arith.mulf %487, %505 : vector<8x1xf32>
    %514 = vector.broadcast %513 : vector<8x1xf32> to vector<8x128xf32>
    %515 = arith.mulf %514, %373 : vector<8x128xf32>
    %516 = arith.addf %512, %515 : vector<8x128xf32>
    %517 = arith.mulf %489, %505 : vector<8x1xf32>
    %518 = vector.broadcast %517 : vector<8x1xf32> to vector<8x128xf32>
    %519 = arith.mulf %518, %374 : vector<8x128xf32>
    %520 = arith.addf %516, %519 : vector<8x128xf32>
    %521 = arith.mulf %491, %505 : vector<8x1xf32>
    %522 = vector.broadcast %521 : vector<8x1xf32> to vector<8x128xf32>
    %523 = arith.mulf %522, %375 : vector<8x128xf32>
    %524 = arith.addf %520, %523 : vector<8x128xf32>
    %525 = arith.mulf %493, %505 : vector<8x1xf32>
    %526 = vector.broadcast %525 : vector<8x1xf32> to vector<8x128xf32>
    %527 = arith.mulf %526, %376 : vector<8x128xf32>
    %528 = arith.addf %524, %527 : vector<8x128xf32>
    %529 = arith.mulf %495, %505 : vector<8x1xf32>
    %530 = vector.broadcast %529 : vector<8x1xf32> to vector<8x128xf32>
    %531 = arith.mulf %530, %377 : vector<8x128xf32>
    %532 = arith.addf %528, %531 : vector<8x128xf32>
    %533 = arith.mulf %497, %505 : vector<8x1xf32>
    %534 = vector.broadcast %533 : vector<8x1xf32> to vector<8x128xf32>
    %535 = arith.mulf %534, %378 : vector<8x128xf32>
    %536 = arith.addf %532, %535 : vector<8x128xf32>
    %537 = arith.truncf %536 : vector<8x128xf32> to vector<8x128xbf16>
    %c0_75 = arith.constant 0 : index
    %c0_76 = arith.constant 0 : index
    %538 = vector.load %arg9[%c0_75, %c0_76] : memref<128x128xbf16, #tpu.memory_space<vmem>>, vector<128x128xbf16>
    %cst_77 = arith.constant dense<0.000000e+00> : vector<8x128xf32>
    %539 = tpu.matmul %537, %538, %cst_77 {dimension_numbers = #tpu.dot_dimension_numbers<[1], [0], [0], [1], [0, 0, 1, 1], [], []>} : vector<8x128xbf16>, vector<128x128xbf16>, vector<8x128xf32> -> vector<8x128xf32>
    %c0_78 = arith.constant 0 : index
    %c0_79 = arith.constant 0 : index
    %540 = vector.load %arg10[%c0_78, %c0_79] : memref<1x128xf32, #tpu.memory_space<vmem>>, vector<1x128xf32>
    %541 = vector.broadcast %540 : vector<1x128xf32> to vector<8x128xf32>
    %542 = arith.addf %539, %541 : vector<8x128xf32>
    %543 = vector.extract_strided_slice %542 {offsets = [0, 0], sizes = [8, 64], strides = [1, 1]} : vector<8x128xf32> to vector<8x64xf32>
    %c0_80 = arith.constant 0 : index
    %c0_81 = arith.constant 0 : index
    %544 = vector.load %arg11[%c0_80, %c0_81] : memref<8x64xf32, #tpu.memory_space<vmem>>, vector<8x64xf32>
    tpu.vector_store %arg11[%c0_80, %c0_81], %543 {strides = array<i32>} : memref<8x64xf32, #tpu.memory_space<vmem>>, vector<8x64xf32>,
    %545 = vector.extract_strided_slice %542 {offsets = [0, 64], sizes = [8, 1], strides = [1, 1]} : vector<8x128xf32> to vector<8x1xf32>
    %546 = math.exp %545 : vector<8x1xf32>
    %c0_82 = arith.constant 0 : index
    %c0_83 = arith.constant 0 : index
    %547 = vector.load %arg12[%c0_82, %c0_83] : memref<8x1xf32, #tpu.memory_space<vmem>>, vector<8x1xf32>
    tpu.vector_store %arg12[%c0_82, %c0_83], %546 {strides = array<i32>} : memref<8x1xf32, #tpu.memory_space<vmem>>, vector<8x1xf32>,
    return
  }
  func.func @transform_0(%arg0: i32) -> (i32, i32, i32) {
    %c0_i32 = arith.constant 0 : i32
    %c0_i32_0 = arith.constant 0 : i32
    %c0_i32_1 = arith.constant 0 : i32
    return %c0_i32, %arg0, %c0_i32_0 : i32, i32, i32
  }
  func.func @transform_1(%arg0: i32) -> (i32, i32, i32) {
    %c0_i32 = arith.constant 0 : i32
    %c0_i32_0 = arith.constant 0 : i32
    %c0_i32_1 = arith.constant 0 : i32
    return %c0_i32, %arg0, %c0_i32_0 : i32, i32, i32
  }
  func.func @transform_2(%arg0: i32) -> (i32, i32) {
    %c0_i32 = arith.constant 0 : i32
    %c0_i32_0 = arith.constant 0 : i32
    %c0_i32_1 = arith.constant 0 : i32
    return %c0_i32, %c0_i32_0 : i32, i32
  }
  func.func @transform_3(%arg0: i32) -> (i32, i32) {
    %c0_i32 = arith.constant 0 : i32
    %c0_i32_0 = arith.constant 0 : i32
    %c0_i32_1 = arith.constant 0 : i32
    return %c0_i32, %c0_i32_0 : i32, i32
  }
  func.func @transform_4(%arg0: i32) -> (i32, i32) {
    %c0_i32 = arith.constant 0 : i32
    %c0_i32_0 = arith.constant 0 : i32
    %c0_i32_1 = arith.constant 0 : i32
    return %c0_i32, %c0_i32_0 : i32, i32
  }
  func.func @transform_5(%arg0: i32) -> (i32, i32) {
    %c0_i32 = arith.constant 0 : i32
    %c0_i32_0 = arith.constant 0 : i32
    %c0_i32_1 = arith.constant 0 : i32
    return %c0_i32, %c0_i32_0 : i32, i32
  }
  func.func @transform_6(%arg0: i32) -> (i32, i32) {
    %c0_i32 = arith.constant 0 : i32
    %c0_i32_0 = arith.constant 0 : i32
    %c0_i32_1 = arith.constant 0 : i32
    return %c0_i32, %c0_i32_0 : i32, i32
  }
  func.func @transform_7(%arg0: i32) -> (i32, i32) {
    %c0_i32 = arith.constant 0 : i32
    %c0_i32_0 = arith.constant 0 : i32
    %c0_i32_1 = arith.constant 0 : i32
    return %c0_i32, %c0_i32_0 : i32, i32
  }
  func.func @transform_8(%arg0: i32) -> (i32, i32) {
    %c0_i32 = arith.constant 0 : i32
    %c0_i32_0 = arith.constant 0 : i32
    %c0_i32_1 = arith.constant 0 : i32
    return %c0_i32, %c0_i32_0 : i32, i32
  }
  func.func @transform_9(%arg0: i32) -> (i32, i32) {
    %c0_i32 = arith.constant 0 : i32
    %c0_i32_0 = arith.constant 0 : i32
    %c0_i32_1 = arith.constant 0 : i32
    return %c0_i32, %c0_i32_0 : i32, i32
  }
  func.func @transform_10(%arg0: i32) -> (i32, i32) {
    %c0_i32 = arith.constant 0 : i32
    %c0_i32_0 = arith.constant 0 : i32
    return %arg0, %c0_i32 : i32, i32
  }
  func.func @transform_11(%arg0: i32) -> (i32, i32) {
    %c0_i32 = arith.constant 0 : i32
    %c0_i32_0 = arith.constant 0 : i32
    return %arg0, %c0_i32 : i32, i32
  }
}

</mosaic_0001>

<llo_original>
// kernel: bsg_encoder_pallas.1
$region0: #{bsg_encoder_pallas.1}
  #allocation0 [shape = 'u32[]', space=smem, size = 0x4, offset = 0x4, fixed_abs, tag = 'smem constant byte address 0x4 - core index']
  #allocation1 [shape = 'u32[144,128]{1,0:T(1,128)}', space=vmem, size = 0x12000, scoped, tag = 'internal scratch']
  #allocation2 [shape = 'f32[1,1]{1,0:T(1,128)S(1)}', space=vmem, size = 0x200, scoped, tag = 'scoped memory for bsg_encoder_pallas.1']
  %s0 = inlined_call_operand.vmem [shape: f32[8,8,128], index: 0, kind: input, shape index: {}]
  %s1 = inlined_call_operand.vmem [shape: f32[8,8,1], index: 1, kind: input, shape index: {}]
  %s2 = inlined_call_operand.vmem [shape: bf16[128,512], index: 2, kind: input, shape index: {}]
  %s3 = inlined_call_operand.vmem [shape: f32[1,512], index: 3, kind: input, shape index: {}]
  %s4 = inlined_call_operand.vmem [shape: bf16[64,256], index: 4, kind: input, shape index: {}]
  %s5 = inlined_call_operand.vmem [shape: bf16[64,256], index: 5, kind: input, shape index: {}]
  %s6 = inlined_call_operand.vmem [shape: f32[1,128], index: 6, kind: input, shape index: {}]
  %s7 = inlined_call_operand.<no memory space> [shape: f32[1,1], index: 7, kind: input, shape index: {}]
  %s8 = inlined_call_operand.vmem [shape: bf16[128,128], index: 8, kind: input, shape index: {}]
  %s9 = inlined_call_operand.vmem [shape: f32[1,128], index: 9, kind: input, shape index: {}]
  %s10 = inlined_call_operand.vmem [shape: f32[8,64], index: 10, kind: output, shape index: {0}]
  %s11 = inlined_call_operand.vmem [shape: f32[8,1], index: 11, kind: output, shape index: {1}]
  %12 = xla_tuple %s10, %s11
  %s13 = sld [smem:[#allocation0]]
  $region58: #{bsg_encoder_pallas.1} parent=0
    _
  %s15 = ssub.s32 1, %s13
  %s16 = scalar_select 0, %s15, %s13
  %v17 = vstv %s7
  %18 = vst [vmem:[#allocation2] sm:$0x1] %v17
  // Predicated region
  $region2: #{bsg_encoder_pallas.1} parent=0 // pred_check
    _
  $region3: #{bsg_encoder_pallas.1} parent=0 // pred_check_branch
    %20 = sbr.rel (0) target = $region5
  $region4: #{bsg_encoder_pallas.1} parent=0 // pred_region
    _
  $region5: #{bsg_encoder_pallas.1} parent=0 // pred_fallthru
    _
  // Predicated region
  $region6: #{bsg_encoder_pallas.1} parent=0 // pred_check
    _
  $region7: #{bsg_encoder_pallas.1} parent=0 // pred_check_branch
    %22 = sbr.rel (0) target = $region9
  $region8: #{bsg_encoder_pallas.1} parent=0 // pred_region
    _
  $region9: #{bsg_encoder_pallas.1} parent=0 // pred_fallthru
    _
  // Predicated region
  $region10: #{bsg_encoder_pallas.1} parent=0 // pred_check
    _
  $region11: #{bsg_encoder_pallas.1} parent=0 // pred_check_branch
    %24 = sbr.rel (0) target = $region13
  $region12: #{bsg_encoder_pallas.1} parent=0 // pred_region
    _
  $region13: #{bsg_encoder_pallas.1} parent=0 // pred_fallthru
    _
  // Predicated region
  $region14: #{bsg_encoder_pallas.1} parent=0 // pred_check
    _
  $region15: #{bsg_encoder_pallas.1} parent=0 // pred_check_branch
    %26 = sbr.rel (0) target = $region17
  $region16: #{bsg_encoder_pallas.1} parent=0 // pred_region
    _
  $region17: #{bsg_encoder_pallas.1} parent=0 // pred_fallthru
    _
  // Predicated region
  $region18: #{bsg_encoder_pallas.1} parent=0 // pred_check
    _
  $region19: #{bsg_encoder_pallas.1} parent=0 // pred_check_branch
    %28 = sbr.rel (0) target = $region21
  $region20: #{bsg_encoder_pallas.1} parent=0 // pred_region
    _
  $region21: #{bsg_encoder_pallas.1} parent=0 // pred_fallthru
    _
  // Predicated region
  $region22: #{bsg_encoder_pallas.1} parent=0 // pred_check
    _
  $region23: #{bsg_encoder_pallas.1} parent=0 // pred_check_branch
    %30 = sbr.rel (0) target = $region25
  $region24: #{bsg_encoder_pallas.1} parent=0 // pred_region
    _
  $region25: #{bsg_encoder_pallas.1} parent=0 // pred_fallthru
    _
  // Predicated region
  $region26: #{bsg_encoder_pallas.1} parent=0 // pred_check
    _
  $region27: #{bsg_encoder_pallas.1} parent=0 // pred_check_branch
    %32 = sbr.rel (0) target = $region29
  $region28: #{bsg_encoder_pallas.1} parent=0 // pred_region
    _
  $region29: #{bsg_encoder_pallas.1} parent=0 // pred_fallthru
    _
  // Predicated region
  $region30: #{bsg_encoder_pallas.1} parent=0 // pred_check
    _
  $region31: #{bsg_encoder_pallas.1} parent=0 // pred_check_branch
    %34 = sbr.rel (0) target = $region33
  $region32: #{bsg_encoder_pallas.1} parent=0 // pred_region
    _
  $region33: #{bsg_encoder_pallas.1} parent=0 // pred_fallthru
    _
  // Predicated region
  $region34: #{bsg_encoder_pallas.1} parent=0 // pred_check
    _
  $region35: #{bsg_encoder_pallas.1} parent=0 // pred_check_branch
    %36 = sbr.rel (0) target = $region37
  $region36: #{bsg_encoder_pallas.1} parent=0 // pred_region
    _
  $region37: #{bsg_encoder_pallas.1} parent=0 // pred_fallthru
    _
  // Predicated region
  $region38: #{bsg_encoder_pallas.1} parent=0 // pred_check
    _
  $region39: #{bsg_encoder_pallas.1} parent=0 // pred_check_branch
    %38 = sbr.rel (0) target = $region41
  $region40: #{bsg_encoder_pallas.1} parent=0 // pred_region
    _
  $region41: #{bsg_encoder_pallas.1} parent=0 // pred_fallthru
    _
  %v40 = vld [vmem:[%s1] sm:$0xff]
  %v41 = vld [vmem:[%s1 + $0x8] sm:$0xff]
  %v42 = vld [vmem:[%s1 + $0x10] sm:$0xff]
  %v43 = vld [vmem:[%s1 + $0x18] sm:$0xff]
  %v44 = vld [vmem:[%s1 + $0x20] sm:$0xff]
  %v45 = vld [vmem:[%s1 + $0x28] sm:$0xff]
  %v46 = vld [vmem:[%s1 + $0x30] sm:$0xff]
  %v47 = vld [vmem:[%s1 + $0x38] sm:$0xff]
  %v48 = vld [vmem:[%s0] sm:$0xff]
  %v49 = vld [vmem:[%s0 + $0x8] sm:$0xff]
  %v50 = vld [vmem:[%s0 + $0x10] sm:$0xff]
  %v51 = vld [vmem:[%s0 + $0x18] sm:$0xff]
  %v52 = vld [vmem:[%s0 + $0x20] sm:$0xff]
  %v53 = vld [vmem:[%s0 + $0x28] sm:$0xff]
  %v54 = vld [vmem:[%s0 + $0x30] sm:$0xff]
  %v55 = vld [vmem:[%s0 + $0x38] sm:$0xff]
  %v56 = vsub.f32 1.0, %v40
  %v57 = vsub.f32 1.0, %v41
  %v58 = vsub.f32 1.0, %v42
  %v59 = vsub.f32 1.0, %v43
  %v60 = vsub.f32 1.0, %v44
  %v61 = vsub.f32 1.0, %v45
  %v62 = vsub.f32 1.0, %v46
  %v63 = vsub.f32 1.0, %v47
  %65 = vset.pattern.permute.xlu0 0
  %66 = vperm.xlu0 %65, %v56
  %v67 = vpop.permute.xlu0 %66
  %70 = vset.pattern.permute.xlu0 0
  %71 = vperm.xlu0 %70, %v57
  %v72 = vpop.permute.xlu0 %71
  %75 = vset.pattern.permute.xlu0 0
  %76 = vperm.xlu0 %75, %v58
  %v77 = vpop.permute.xlu0 %76
  %80 = vset.pattern.permute.xlu0 0
  %81 = vperm.xlu0 %80, %v59
  %v82 = vpop.permute.xlu0 %81
  %85 = vset.pattern.permute.xlu0 0
  %86 = vperm.xlu0 %85, %v60
  %v87 = vpop.permute.xlu0 %86
  %90 = vset.pattern.permute.xlu0 0
  %91 = vperm.xlu0 %90, %v61
  %v92 = vpop.permute.xlu0 %91
  %95 = vset.pattern.permute.xlu0 0
  %96 = vperm.xlu0 %95, %v62
  %v97 = vpop.permute.xlu0 %96
  %100 = vset.pattern.permute.xlu0 0
  %101 = vperm.xlu0 %100, %v63
  %v102 = vpop.permute.xlu0 %101
  %v104 = vmul.f32 %v48, %v67
  %v105 = vmul.f32 %v49, %v72
  %v106 = vmul.f32 %v50, %v77
  %v107 = vmul.f32 %v51, %v82
  %v108 = vmul.f32 %v52, %v87
  %v109 = vmul.f32 %v53, %v92
  %v110 = vmul.f32 %v54, %v97
  %v111 = vmul.f32 %v55, %v102
  %v112 = vpack.c.bf16 %v105, %v104
  %v113 = vpack.c.bf16 %v107, %v106
  %v114 = vpack.c.bf16 %v109, %v108
  %v115 = vpack.c.bf16 %v111, %v110
  %v116 = vld [vmem:[%s2] sm:$0xff]
  %v117 = vld [vmem:[%s2 + $0x8] sm:$0xff]
  %v118 = vld [vmem:[%s2 + $0x10] sm:$0xff]
  %v119 = vld [vmem:[%s2 + $0x18] sm:$0xff]
  %v120 = vld [vmem:[%s2 + $0x20] sm:$0xff]
  %v121 = vld [vmem:[%s2 + $0x28] sm:$0xff]
  %v122 = vld [vmem:[%s2 + $0x30] sm:$0xff]
  %v123 = vld [vmem:[%s2 + $0x38] sm:$0xff]
  %v124 = vld [vmem:[%s2 + $0x40] sm:$0xff]
  %v125 = vld [vmem:[%s2 + $0x48] sm:$0xff]
  %v126 = vld [vmem:[%s2 + $0x50] sm:$0xff]
  %v127 = vld [vmem:[%s2 + $0x58] sm:$0xff]
  %v128 = vld [vmem:[%s2 + $0x60] sm:$0xff]
  %v129 = vld [vmem:[%s2 + $0x68] sm:$0xff]
  %v130 = vld [vmem:[%s2 + $0x70] sm:$0xff]
  %v131 = vld [vmem:[%s2 + $0x78] sm:$0xff]
  %v132 = vld [vmem:[%s2 + $0x80] sm:$0xff]
  %v133 = vld [vmem:[%s2 + $0x88] sm:$0xff]
  %v134 = vld [vmem:[%s2 + $0x90] sm:$0xff]
  %v135 = vld [vmem:[%s2 + $0x98] sm:$0xff]
  %v136 = vld [vmem:[%s2 + $0xa0] sm:$0xff]
  %v137 = vld [vmem:[%s2 + $0xa8] sm:$0xff]
  %v138 = vld [vmem:[%s2 + $0xb0] sm:$0xff]
  %v139 = vld [vmem:[%s2 + $0xb8] sm:$0xff]
  %v140 = vld [vmem:[%s2 + $0xc0] sm:$0xff]
  %v141 = vld [vmem:[%s2 + $0xc8] sm:$0xff]
  %v142 = vld [vmem:[%s2 + $0xd0] sm:$0xff]
  %v143 = vld [vmem:[%s2 + $0xd8] sm:$0xff]
  %v144 = vld [vmem:[%s2 + $0xe0] sm:$0xff]
  %v145 = vld [vmem:[%s2 + $0xe8] sm:$0xff]
  %v146 = vld [vmem:[%s2 + $0xf0] sm:$0xff]
  %v147 = vld [vmem:[%s2 + $0xf8] sm:$0xff]
  %v148 = vld [vmem:[%s3] sm:$0xf]
  %v150 = vlaneseq
  %v151 = vshrl.u32 %v150, 7
  %v152 = vsub.s32 0, %v151
  %v153 = vrot.slane %v148, %v152
  %v154 = vlaneseq
  %v155 = vshrl.u32 %v154, 7
  %v156 = vsub.s32 1, %v155
  %v157 = vrot.slane %v148, %v156
  %v158 = vlaneseq
  %v159 = vshrl.u32 %v158, 7
  %v160 = vsub.s32 2, %v159
  %v161 = vrot.slane %v148, %v160
  %v162 = vlaneseq
  %v163 = vshrl.u32 %v162, 7
  %v164 = vsub.s32 3, %v163
  %v165 = vrot.slane %v148, %v164
  %v202 = vunpack.c.l.b16 %v116
  %v203 = vunpack.c.h.b16 %v116
  %v204 = vunpack.c.l.b16 %v117
  %v205 = vunpack.c.h.b16 %v117
  %v206 = vunpack.c.l.b16 %v118
  %v207 = vunpack.c.h.b16 %v118
  %v208 = vunpack.c.l.b16 %v119
  %v209 = vunpack.c.h.b16 %v119
  %v210 = vunpack.c.l.b16 %v120
  %v211 = vunpack.c.h.b16 %v120
  %v212 = vunpack.c.l.b16 %v121
  %v213 = vunpack.c.h.b16 %v121
  %v214 = vunpack.c.l.b16 %v122
  %v215 = vunpack.c.h.b16 %v122
  %v216 = vunpack.c.l.b16 %v123
  %v217 = vunpack.c.h.b16 %v123
  %v218 = vunpack.c.l.b16 %v124
  %v219 = vunpack.c.h.b16 %v124
  %v220 = vunpack.c.l.b16 %v125
  %v221 = vunpack.c.h.b16 %v125
  %v222 = vunpack.c.l.b16 %v126
  %v223 = vunpack.c.h.b16 %v126
  %v224 = vunpack.c.l.b16 %v127
  %v225 = vunpack.c.h.b16 %v127
  %v226 = vunpack.c.l.b16 %v128
  %v227 = vunpack.c.h.b16 %v128
  %v228 = vunpack.c.l.b16 %v129
  %v229 = vunpack.c.h.b16 %v129
  %v230 = vunpack.c.l.b16 %v130
  %v231 = vunpack.c.h.b16 %v130
  %v232 = vunpack.c.l.b16 %v131
  %v233 = vunpack.c.h.b16 %v131
  %v234 = vunpack.c.l.b16 %v132
  %v235 = vunpack.c.h.b16 %v132
  %v236 = vunpack.c.l.b16 %v133
  %v237 = vunpack.c.h.b16 %v133
  %v238 = vunpack.c.l.b16 %v134
  %v239 = vunpack.c.h.b16 %v134
  %v240 = vunpack.c.l.b16 %v135
  %v241 = vunpack.c.h.b16 %v135
  %v242 = vunpack.c.l.b16 %v136
  %v243 = vunpack.c.h.b16 %v136
  %v244 = vunpack.c.l.b16 %v137
  %v245 = vunpack.c.h.b16 %v137
  %v246 = vunpack.c.l.b16 %v138
  %v247 = vunpack.c.h.b16 %v138
  %v248 = vunpack.c.l.b16 %v139
  %v249 = vunpack.c.h.b16 %v139
  %v250 = vunpack.c.l.b16 %v140
  %v251 = vunpack.c.h.b16 %v140
  %v252 = vunpack.c.l.b16 %v141
  %v253 = vunpack.c.h.b16 %v141
  %v254 = vunpack.c.l.b16 %v142
  %v255 = vunpack.c.h.b16 %v142
  %v256 = vunpack.c.l.b16 %v143
  %v257 = vunpack.c.h.b16 %v143
  %v258 = vunpack.c.l.b16 %v144
  %v259 = vunpack.c.h.b16 %v144
  %v260 = vunpack.c.l.b16 %v145
  %v261 = vunpack.c.h.b16 %v145
  %v262 = vunpack.c.l.b16 %v146
  %v263 = vunpack.c.h.b16 %v146
  %v264 = vunpack.c.l.b16 %v147
  %v265 = vunpack.c.h.b16 %v147
  %v266 = vpack.c.b16 %v206, %v202
  %v267 = vpack.c.b16 %v207, %v203
  %v268 = vpack.c.b16 %v208, %v204
  %v269 = vpack.c.b16 %v209, %v205
  %v270 = vpack.c.b16 %v214, %v210
  %v271 = vpack.c.b16 %v215, %v211
  %v272 = vpack.c.b16 %v216, %v212
  %v273 = vpack.c.b16 %v217, %v213
  %v274 = vpack.c.b16 %v222, %v218
  %v275 = vpack.c.b16 %v223, %v219
  %v276 = vpack.c.b16 %v224, %v220
  %v277 = vpack.c.b16 %v225, %v221
  %v278 = vpack.c.b16 %v230, %v226
  %v279 = vpack.c.b16 %v231, %v227
  %v280 = vpack.c.b16 %v232, %v228
  %v281 = vpack.c.b16 %v233, %v229
  %v282 = vpack.c.b16 %v238, %v234
  %v283 = vpack.c.b16 %v239, %v235
  %v284 = vpack.c.b16 %v240, %v236
  %v285 = vpack.c.b16 %v241, %v237
  %v286 = vpack.c.b16 %v246, %v242
  %v287 = vpack.c.b16 %v247, %v243
  %v288 = vpack.c.b16 %v248, %v244
  %v289 = vpack.c.b16 %v249, %v245
  %v290 = vpack.c.b16 %v254, %v250
  %v291 = vpack.c.b16 %v255, %v251
  %v292 = vpack.c.b16 %v256, %v252
  %v293 = vpack.c.b16 %v257, %v253
  %v294 = vpack.c.b16 %v262, %v258
  %v295 = vpack.c.b16 %v263, %v259
  %v296 = vpack.c.b16 %v264, %v260
  %v297 = vpack.c.b16 %v265, %v261
  %330 = vmatprep.subr.bf16.mxu0 %v295
  %331 = vmatpush1.bf16.msra.mxu0 %v294
  %332 = vmatprep.subr.bf16.mxu0 %v291
  %333 = vmatpush1.bf16.msra.mxu0 %v290
  %334 = vmatprep.subr.bf16.mxu0 %v287
  %335 = vmatpush1.bf16.msra.mxu0 %v286
  %336 = vmatprep.subr.bf16.mxu0 %v283
  %337 = vmatpush1.bf16.msra.mxu0 %v282
  %338 = vmatprep.subr.bf16.mxu0 %v279
  %339 = vmatpush1.bf16.msra.mxu0 %v278
  %340 = vmatprep.subr.bf16.mxu0 %v275
  %341 = vmatpush1.bf16.msra.mxu0 %v274
  %342 = vmatprep.subr.bf16.mxu0 %v271
  %343 = vmatpush1.bf16.msra.mxu0 %v270
  %344 = vmatprep.subr.bf16.mxu0 %v267
  %345 = vmatpush1.bf16.msra.mxu0 %v266
  %346 = vmatprep.subr.bf16.mxu0 0
  %347 = vmatpush2.bf16.msra.mxu0 0
  %348 = vmatprep.subr.bf16.mxu0 0
  %349 = vmatpush2.bf16.msra.mxu0 0
  %350 = vmatprep.subr.bf16.mxu0 0
  %351 = vmatpush2.bf16.msra.mxu0 0
  %352 = vmatprep.subr.bf16.mxu0 0
  %353 = vmatpush2.bf16.msra.mxu0 0
  %354 = vmatprep.subr.bf16.mxu0 0
  %355 = vmatpush2.bf16.msra.mxu0 0
  %356 = vmatprep.subr.bf16.mxu0 0
  %357 = vmatpush2.bf16.msra.mxu0 0
  %358 = vmatprep.subr.bf16.mxu0 0
  %359 = vmatpush2.bf16.msra.mxu0 0
  %360 = vmatprep.subr.bf16.mxu0 0
  %361 = vmatpush2.bf16.msra.mxu0 0
  %362 = vmatprep.mubr.bf16.mxu0 0
  %363 = vmatmul.mubr.bf16.gmra.mxu0 %v112
  %v364 = vpop.f32.mrf.mxu0
  %v365 = vadd.f32 %v153, %v364
  %v366 = vpop.f32.mrf.mxu0
  %v367 = vadd.f32 %v157, %v366
  %v368 = vpop.f32.mrf.mxu0
  %v369 = vadd.f32 %v153, %v368
  %v370 = vpop.f32.mrf.mxu0
  %v371 = vadd.f32 %v157, %v370
  %372 = vmatprep.mubr.bf16.mxu0 0
  %373 = vmatmul.mubr.bf16.gmra.mxu0 %v113
  %v374 = vpop.f32.mrf.mxu0
  %v375 = vadd.f32 %v153, %v374
  %v376 = vpop.f32.mrf.mxu0
  %v377 = vadd.f32 %v157, %v376
  %v378 = vpop.f32.mrf.mxu0
  %v379 = vadd.f32 %v153, %v378
  %v380 = vpop.f32.mrf.mxu0
  %v381 = vadd.f32 %v157, %v380
  %382 = vmatprep.mubr.bf16.mxu0 0
  %383 = vmatmul.mubr.bf16.gmra.mxu0 %v114
  %v384 = vpop.f32.mrf.mxu0
  %v385 = vadd.f32 %v153, %v384
  %v386 = vpop.f32.mrf.mxu0
  %v387 = vadd.f32 %v157, %v386
  %v388 = vpop.f32.mrf.mxu0
  %v389 = vadd.f32 %v153, %v388
  %v390 = vpop.f32.mrf.mxu0
  %v391 = vadd.f32 %v157, %v390
  %392 = vmatprep.mubr.bf16.mxu0 0
  %393 = vmatmul.mubr.bf16.gmra.mxu0 %v115
  %v394 = vpop.f32.mrf.mxu0
  %v395 = vadd.f32 %v153, %v394
  %v396 = vpop.f32.mrf.mxu0
  %v397 = vadd.f32 %v157, %v396
  %v398 = vpop.f32.mrf.mxu0
  %v399 = vadd.f32 %v153, %v398
  %v400 = vpop.f32.mrf.mxu0
  %v401 = vadd.f32 %v157, %v400
  %402 = vdwg.mxu0
  %403 = vmatprep.subr.bf16.mxu0 %v297
  %404 = vmatpush1.bf16.msra.mxu0 %v296
  %405 = vmatprep.subr.bf16.mxu0 %v293
  %406 = vmatpush1.bf16.msra.mxu0 %v292
  %407 = vmatprep.subr.bf16.mxu0 %v289
  %408 = vmatpush1.bf16.msra.mxu0 %v288
  %409 = vmatprep.subr.bf16.mxu0 %v285
  %410 = vmatpush1.bf16.msra.mxu0 %v284
  %411 = vmatprep.subr.bf16.mxu0 %v281
  %412 = vmatpush1.bf16.msra.mxu0 %v280
  %413 = vmatprep.subr.bf16.mxu0 %v277
  %414 = vmatpush1.bf16.msra.mxu0 %v276
  %415 = vmatprep.subr.bf16.mxu0 %v273
  %416 = vmatpush1.bf16.msra.mxu0 %v272
  %417 = vmatprep.subr.bf16.mxu0 %v269
  %418 = vmatpush1.bf16.msra.mxu0 %v268
  %419 = vmatprep.subr.bf16.mxu0 0
  %420 = vmatpush2.bf16.msra.mxu0 0
  %421 = vmatprep.subr.bf16.mxu0 0
  %422 = vmatpush2.bf16.msra.mxu0 0
  %423 = vmatprep.subr.bf16.mxu0 0
  %424 = vmatpush2.bf16.msra.mxu0 0
  %425 = vmatprep.subr.bf16.mxu0 0
  %426 = vmatpush2.bf16.msra.mxu0 0
  %427 = vmatprep.subr.bf16.mxu0 0
  %428 = vmatpush2.bf16.msra.mxu0 0
  %429 = vmatprep.subr.bf16.mxu0 0
  %430 = vmatpush2.bf16.msra.mxu0 0
  %431 = vmatprep.subr.bf16.mxu0 0
  %432 = vmatpush2.bf16.msra.mxu0 0
  %433 = vmatprep.subr.bf16.mxu0 0
  %434 = vmatpush2.bf16.msra.mxu0 0
  %435 = vmatprep.mubr.bf16.mxu0 0
  %436 = vmatmul.mubr.bf16.gmra.mxu0 %v112
  %v437 = vpop.f32.mrf.mxu0
  %v438 = vadd.f32 %v161, %v437
  %v439 = vpop.f32.mrf.mxu0
  %v440 = vadd.f32 %v165, %v439
  %v441 = vpop.f32.mrf.mxu0
  %v442 = vadd.f32 %v161, %v441
  %v443 = vpop.f32.mrf.mxu0
  %v444 = vadd.f32 %v165, %v443
  %445 = vmatprep.mubr.bf16.mxu0 0
  %446 = vmatmul.mubr.bf16.gmra.mxu0 %v113
  %v447 = vpop.f32.mrf.mxu0
  %v448 = vadd.f32 %v161, %v447
  %v449 = vpop.f32.mrf.mxu0
  %v450 = vadd.f32 %v165, %v449
  %v451 = vpop.f32.mrf.mxu0
  %v452 = vadd.f32 %v161, %v451
  %v453 = vpop.f32.mrf.mxu0
  %v454 = vadd.f32 %v165, %v453
  %455 = vmatprep.mubr.bf16.mxu0 0
  %456 = vmatmul.mubr.bf16.gmra.mxu0 %v114
  %v457 = vpop.f32.mrf.mxu0
  %v458 = vadd.f32 %v161, %v457
  %v459 = vpop.f32.mrf.mxu0
  %v460 = vadd.f32 %v165, %v459
  %v461 = vpop.f32.mrf.mxu0
  %v462 = vadd.f32 %v161, %v461
  %v463 = vpop.f32.mrf.mxu0
  %v464 = vadd.f32 %v165, %v463
  %465 = vmatprep.mubr.bf16.mxu0 0
  %466 = vmatmul.mubr.bf16.gmra.mxu0 %v115
  %v467 = vpop.f32.mrf.mxu0
  %v468 = vadd.f32 %v161, %v467
  %v469 = vpop.f32.mrf.mxu0
  %v470 = vadd.f32 %v165, %v469
  %v471 = vpop.f32.mrf.mxu0
  %v472 = vadd.f32 %v161, %v471
  %v473 = vpop.f32.mrf.mxu0
  %v474 = vadd.f32 %v165, %v473
  %475 = vdwg.mxu0
  %v476 = vld [vmem:[%s4] sm:$0xff]
  %v477 = vld [vmem:[%s4 + $0x8] sm:$0xff]
  %v478 = vld [vmem:[%s4 + $0x10] sm:$0xff]
  %v479 = vld [vmem:[%s4 + $0x18] sm:$0xff]
  %v480 = vld [vmem:[%s4 + $0x20] sm:$0xff]
  %v481 = vld [vmem:[%s4 + $0x28] sm:$0xff]
  %v482 = vld [vmem:[%s4 + $0x30] sm:$0xff]
  %v483 = vld [vmem:[%s4 + $0x38] sm:$0xff]
  %v484 = vld [vmem:[%s5] sm:$0xff]
  %v485 = vld [vmem:[%s5 + $0x8] sm:$0xff]
  %v486 = vld [vmem:[%s5 + $0x10] sm:$0xff]
  %v487 = vld [vmem:[%s5 + $0x18] sm:$0xff]
  %v488 = vld [vmem:[%s5 + $0x20] sm:$0xff]
  %v489 = vld [vmem:[%s5 + $0x28] sm:$0xff]
  %v490 = vld [vmem:[%s5 + $0x30] sm:$0xff]
  %v491 = vld [vmem:[%s5 + $0x38] sm:$0xff]
  %v500 = vunpack.c.l.b16 %v476
  %v501 = vunpack.c.h.b16 %v476
  %v502 = vunpack.c.l.b16 %v477
  %v503 = vunpack.c.h.b16 %v477
  %v504 = vunpack.c.l.b16 %v478
  %v505 = vunpack.c.h.b16 %v478
  %v506 = vunpack.c.l.b16 %v479
  %v507 = vunpack.c.h.b16 %v479
  %v508 = vunpack.c.l.b16 %v480
  %v509 = vunpack.c.h.b16 %v480
  %v510 = vunpack.c.l.b16 %v481
  %v511 = vunpack.c.h.b16 %v481
  %v512 = vunpack.c.l.b16 %v482
  %v513 = vunpack.c.h.b16 %v482
  %v514 = vunpack.c.l.b16 %v483
  %v515 = vunpack.c.h.b16 %v483
  %v516 = vpack.c.b16 %v502, %v500
  %v517 = vpack.c.b16 %v503, %v501
  %v518 = vpack.c.b16 %v506, %v504
  %v519 = vpack.c.b16 %v507, %v505
  %v520 = vpack.c.b16 %v510, %v508
  %v521 = vpack.c.b16 %v511, %v509
  %v522 = vpack.c.b16 %v514, %v512
  %v523 = vpack.c.b16 %v515, %v513
  %vm532 = vcmask 523264
  %v534 = vsel %vm532, 0, 0
  %536 = vmatprep.subr.bf16.mxu0 0
  %537 = vmatpush1.bf16.msra.mxu0 0
  %538 = vmatprep.subr.bf16.mxu0 0
  %539 = vmatpush1.bf16.msra.mxu0 0
  %540 = vmatprep.subr.bf16.mxu0 0
  %541 = vmatpush1.bf16.msra.mxu0 0
  %542 = vmatprep.subr.bf16.mxu0 0
  %543 = vmatpush1.bf16.msra.mxu0 0
  %544 = vmatprep.subr.bf16.mxu0 %v523
  %545 = vmatpush1.bf16.msra.mxu0 %v522
  %546 = vmatprep.subr.bf16.mxu0 %v521
  %547 = vmatpush1.bf16.msra.mxu0 %v520
  %548 = vmatprep.subr.bf16.mxu0 %v519
  %549 = vmatpush1.bf16.msra.mxu0 %v518
  %550 = vmatprep.subr.bf16.mxu0 %v517
  %551 = vmatpush1.bf16.msra.mxu0 %v516
  %552 = vmatprep.subr.bf16.mxu0 0
  %553 = vmatpush2.bf16.msra.mxu0 0
  %554 = vmatprep.subr.bf16.mxu0 0
  %555 = vmatpush2.bf16.msra.mxu0 0
  %556 = vmatprep.subr.bf16.mxu0 0
  %557 = vmatpush2.bf16.msra.mxu0 0
  %558 = vmatprep.subr.bf16.mxu0 0
  %559 = vmatpush2.bf16.msra.mxu0 0
  %560 = vmatprep.subr.bf16.mxu0 0
  %561 = vmatpush2.bf16.msra.mxu0 0
  %562 = vmatprep.subr.bf16.mxu0 0
  %563 = vmatpush2.bf16.msra.mxu0 0
  %564 = vmatprep.subr.bf16.mxu0 0
  %565 = vmatpush2.bf16.msra.mxu0 0
  %566 = vmatprep.subr.bf16.mxu0 0
  %567 = vmatpush2.bf16.msra.mxu0 0
  %568 = vmatprep.mubr.bf16.mxu0 0
  %569 = vmatmul.mubr.bf16.gmra.mxu0 %v534
  %v570 = vpop.f32.mrf.mxu0
  %v571 = vadd.f32 0.0, %v570
  %v572 = vpop.f32.mrf.mxu0
  %v573 = vadd.f32 0.0, %v572
  %v574 = vpop.f32.mrf.mxu0
  %v575 = vpop.f32.mrf.mxu0
  %576 = vdwg.mxu0
  %v577 = vadd.f32 %v365, %v571
  %v578 = vadd.f32 %v367, %v573
  %v579 = vxor.u32 %v577, 2147483648
  %v580 = vxor.u32 %v578, 2147483648
  %v581 = vmul.f32 %v579, 1.442695
  %v582 = vpow.pop %v581
  %v583 = vmul.f32 %v580, 1.442695
  %v584 = vpow.pop %v583
  %v585 = vadd.f32 %v582, 1.0
  %v586 = vadd.f32 %v584, 1.0
  %v587 = vrcp.pop %v585
  %v588 = vmul.f32 1.0, %v587
  %v589 = vrcp.pop %v586
  %v590 = vmul.f32 1.0, %v589
  %v591 = vtanh.pop %v578
  %v592 = vmul.f32 %v588, 0.0
  %594 = vrot.lane.b32.xlu0 %v591, 64
  %v595 = vpop.permute.xlu0 %594
  %v597 = vmul.f32 %v588, %v595
  %599 = vrot.lane.b32.xlu0 %v597, 64
  %v600 = vpop.permute.xlu0 %599
  %v602 = vadd.f32 %v592, %v600
  %v603 = vtanh.pop %v602
  %605 = vrot.lane.b32.xlu0 %v603, 64
  %v606 = vpop.permute.xlu0 %605
  %v608 = vmul.f32 %v590, %v606
  %v617 = vunpack.c.l.b16 %v484
  %v618 = vunpack.c.h.b16 %v484
  %v619 = vunpack.c.l.b16 %v485
  %v620 = vunpack.c.h.b16 %v485
  %v621 = vunpack.c.l.b16 %v486
  %v622 = vunpack.c.h.b16 %v486
  %v623 = vunpack.c.l.b16 %v487
  %v624 = vunpack.c.h.b16 %v487
  %v625 = vunpack.c.l.b16 %v488
  %v626 = vunpack.c.h.b16 %v488
  %v627 = vunpack.c.l.b16 %v489
  %v628 = vunpack.c.h.b16 %v489
  %v629 = vunpack.c.l.b16 %v490
  %v630 = vunpack.c.h.b16 %v490
  %v631 = vunpack.c.l.b16 %v491
  %v632 = vunpack.c.h.b16 %v491
  %v633 = vpack.c.b16 %v619, %v617
  %v634 = vpack.c.b16 %v620, %v618
  %v635 = vpack.c.b16 %v623, %v621
  %v636 = vpack.c.b16 %v624, %v622
  %v637 = vpack.c.b16 %v627, %v625
  %v638 = vpack.c.b16 %v628, %v626
  %v639 = vpack.c.b16 %v631, %v629
  %v640 = vpack.c.b16 %v632, %v630
  %649 = vmatprep.subr.bf16.mxu0 0
  %650 = vmatpush1.bf16.msra.mxu0 0
  %651 = vmatprep.subr.bf16.mxu0 0
  %652 = vmatpush1.bf16.msra.mxu0 0
  %653 = vmatprep.subr.bf16.mxu0 0
  %654 = vmatpush1.bf16.msra.mxu0 0
  %655 = vmatprep.subr.bf16.mxu0 0
  %656 = vmatpush1.bf16.msra.mxu0 0
  %657 = vmatprep.subr.bf16.mxu0 %v640
  %658 = vmatpush1.bf16.msra.mxu0 %v639
  %659 = vmatprep.subr.bf16.mxu0 %v638
  %660 = vmatpush1.bf16.msra.mxu0 %v637
  %661 = vmatprep.subr.bf16.mxu0 %v636
  %662 = vmatpush1.bf16.msra.mxu0 %v635
  %663 = vmatprep.subr.bf16.mxu0 %v634
  %664 = vmatpush1.bf16.msra.mxu0 %v633
  %665 = vmatprep.subr.bf16.mxu0 0
  %666 = vmatpush2.bf16.msra.mxu0 0
  %667 = vmatprep.subr.bf16.mxu0 0
  %668 = vmatpush2.bf16.msra.mxu0 0
  %669 = vmatprep.subr.bf16.mxu0 0
  %670 = vmatpush2.bf16.msra.mxu0 0
  %671 = vmatprep.subr.bf16.mxu0 0
  %672 = vmatpush2.bf16.msra.mxu0 0
  %673 = vmatprep.subr.bf16.mxu0 0
  %674 = vmatpush2.bf16.msra.mxu0 0
  %675 = vmatprep.subr.bf16.mxu0 0
  %676 = vmatpush2.bf16.msra.mxu0 0
  %677 = vmatprep.subr.bf16.mxu0 0
  %678 = vmatpush2.bf16.msra.mxu0 0
  %679 = vmatprep.subr.bf16.mxu0 0
  %680 = vmatpush2.bf16.msra.mxu0 0
  %681 = vmatprep.mubr.bf16.mxu0 0
  %682 = vmatmul.mubr.bf16.gmra.mxu0 %v534
  %v683 = vpop.f32.mrf.mxu0
  %v684 = vadd.f32 0.0, %v683
  %v685 = vpop.f32.mrf.mxu0
  %v686 = vadd.f32 0.0, %v685
  %v687 = vpop.f32.mrf.mxu0
  %v688 = vpop.f32.mrf.mxu0
  %689 = vdwg.mxu0
  %v690 = vadd.f32 %v472, %v684
  %v691 = vadd.f32 %v474, %v686
  %v692 = vxor.u32 %v690, 2147483648
  %v693 = vxor.u32 %v691, 2147483648
  %v694 = vmul.f32 %v692, 1.442695
  %v695 = vpow.pop %v694
  %v696 = vmul.f32 %v693, 1.442695
  %v697 = vpow.pop %v696
  %v698 = vadd.f32 %v695, 1.0
  %v699 = vadd.f32 %v697, 1.0
  %v700 = vrcp.pop %v698
  %v701 = vmul.f32 1.0, %v700
  %v702 = vrcp.pop %v699
  %v703 = vmul.f32 1.0, %v702
  %v704 = vtanh.pop %v691
  %v705 = vmul.f32 %v701, 0.0
  %707 = vrot.lane.b32.xlu0 %v704, 64
  %v708 = vpop.permute.xlu0 %707
  %v710 = vmul.f32 %v701, %v708
  %712 = vrot.lane.b32.xlu0 %v710, 64
  %v713 = vpop.permute.xlu0 %712
  %v715 = vadd.f32 %v705, %v713
  %v716 = vtanh.pop %v715
  %718 = vrot.lane.b32.xlu0 %v716, 64
  %v719 = vpop.permute.xlu0 %718
  %v721 = vmul.f32 %v703, %v719
  %v722 = vpack.c.bf16 %v608, %v608
  %v724 = vsel %vm532, %v722, 0
  %726 = vmatprep.subr.bf16.mxu0 0
  %727 = vmatpush1.bf16.msra.mxu0 0
  %728 = vmatprep.subr.bf16.mxu0 0
  %729 = vmatpush1.bf16.msra.mxu0 0
  %730 = vmatprep.subr.bf16.mxu0 0
  %731 = vmatpush1.bf16.msra.mxu0 0
  %732 = vmatprep.subr.bf16.mxu0 0
  %733 = vmatpush1.bf16.msra.mxu0 0
  %734 = vmatprep.subr.bf16.mxu0 %v523
  %735 = vmatpush1.bf16.msra.mxu0 %v522
  %736 = vmatprep.subr.bf16.mxu0 %v521
  %737 = vmatpush1.bf16.msra.mxu0 %v520
  %738 = vmatprep.subr.bf16.mxu0 %v519
  %739 = vmatpush1.bf16.msra.mxu0 %v518
  %740 = vmatprep.subr.bf16.mxu0 %v517
  %741 = vmatpush1.bf16.msra.mxu0 %v516
  %742 = vmatprep.subr.bf16.mxu0 0
  %743 = vmatpush2.bf16.msra.mxu0 0
  %744 = vmatprep.subr.bf16.mxu0 0
  %745 = vmatpush2.bf16.msra.mxu0 0
  %746 = vmatprep.subr.bf16.mxu0 0
  %747 = vmatpush2.bf16.msra.mxu0 0
  %748 = vmatprep.subr.bf16.mxu0 0
  %749 = vmatpush2.bf16.msra.mxu0 0
  %750 = vmatprep.subr.bf16.mxu0 0
  %751 = vmatpush2.bf16.msra.mxu0 0
  %752 = vmatprep.subr.bf16.mxu0 0
  %753 = vmatpush2.bf16.msra.mxu0 0
  %754 = vmatprep.subr.bf16.mxu0 0
  %755 = vmatpush2.bf16.msra.mxu0 0
  %756 = vmatprep.subr.bf16.mxu0 0
  %757 = vmatpush2.bf16.msra.mxu0 0
  %758 = vmatprep.mubr.bf16.mxu0 0
  %759 = vmatmul.mubr.bf16.gmra.mxu0 %v724
  %v760 = vpop.f32.mrf.mxu0
  %v761 = vadd.f32 0.0, %v760
  %v762 = vpop.f32.mrf.mxu0
  %v763 = vadd.f32 0.0, %v762
  %v764 = vpop.f32.mrf.mxu0
  %v765 = vpop.f32.mrf.mxu0
  %766 = vdwg.mxu0
  %v767 = vadd.f32 %v369, %v761
  %v768 = vadd.f32 %v371, %v763
  %v769 = vxor.u32 %v767, 2147483648
  %v770 = vxor.u32 %v768, 2147483648
  %v771 = vmul.f32 %v769, 1.442695
  %v772 = vpow.pop %v771
  %v773 = vmul.f32 %v770, 1.442695
  %v774 = vpow.pop %v773
  %v775 = vadd.f32 %v772, 1.0
  %v776 = vadd.f32 %v774, 1.0
  %v777 = vrcp.pop %v775
  %v778 = vmul.f32 1.0, %v777
  %v779 = vrcp.pop %v776
  %v780 = vmul.f32 1.0, %v779
  %v781 = vtanh.pop %v768
  %v782 = vmul.f32 %v778, %v602
  %784 = vrot.lane.b32.xlu0 %v781, 64
  %v785 = vpop.permute.xlu0 %784
  %v787 = vmul.f32 %v778, %v785
  %789 = vrot.lane.b32.xlu0 %v787, 64
  %v790 = vpop.permute.xlu0 %789
  %v792 = vadd.f32 %v782, %v790
  %v793 = vtanh.pop %v792
  %795 = vrot.lane.b32.xlu0 %v793, 64
  %v796 = vpop.permute.xlu0 %795
  %v798 = vmul.f32 %v780, %v796
  %v799 = vpack.c.bf16 %v721, %v721
  %v801 = vsel %vm532, %v799, 0
  %803 = vmatprep.subr.bf16.mxu0 0
  %804 = vmatpush1.bf16.msra.mxu0 0
  %805 = vmatprep.subr.bf16.mxu0 0
  %806 = vmatpush1.bf16.msra.mxu0 0
  %807 = vmatprep.subr.bf16.mxu0 0
  %808 = vmatpush1.bf16.msra.mxu0 0
  %809 = vmatprep.subr.bf16.mxu0 0
  %810 = vmatpush1.bf16.msra.mxu0 0
  %811 = vmatprep.subr.bf16.mxu0 %v640
  %812 = vmatpush1.bf16.msra.mxu0 %v639
  %813 = vmatprep.subr.bf16.mxu0 %v638
  %814 = vmatpush1.bf16.msra.mxu0 %v637
  %815 = vmatprep.subr.bf16.mxu0 %v636
  %816 = vmatpush1.bf16.msra.mxu0 %v635
  %817 = vmatprep.subr.bf16.mxu0 %v634
  %818 = vmatpush1.bf16.msra.mxu0 %v633
  %819 = vmatprep.subr.bf16.mxu0 0
  %820 = vmatpush2.bf16.msra.mxu0 0
  %821 = vmatprep.subr.bf16.mxu0 0
  %822 = vmatpush2.bf16.msra.mxu0 0
  %823 = vmatprep.subr.bf16.mxu0 0
  %824 = vmatpush2.bf16.msra.mxu0 0
  %825 = vmatprep.subr.bf16.mxu0 0
  %826 = vmatpush2.bf16.msra.mxu0 0
  %827 = vmatprep.subr.bf16.mxu0 0
  %828 = vmatpush2.bf16.msra.mxu0 0
  %829 = vmatprep.subr.bf16.mxu0 0
  %830 = vmatpush2.bf16.msra.mxu0 0
  %831 = vmatprep.subr.bf16.mxu0 0
  %832 = vmatpush2.bf16.msra.mxu0 0
  %833 = vmatprep.subr.bf16.mxu0 0
  %834 = vmatpush2.bf16.msra.mxu0 0
  %835 = vmatprep.mubr.bf16.mxu0 0
  %836 = vmatmul.mubr.bf16.gmra.mxu0 %v801
  %v837 = vpop.f32.mrf.mxu0
  %v838 = vadd.f32 0.0, %v837
  %v839 = vpop.f32.mrf.mxu0
  %v840 = vadd.f32 0.0, %v839
  %v841 = vpop.f32.mrf.mxu0
  %v842 = vpop.f32.mrf.mxu0
  %843 = vdwg.mxu0
  %v844 = vadd.f32 %v468, %v838
  %v845 = vadd.f32 %v470, %v840
  %v846 = vxor.u32 %v844, 2147483648
  %v847 = vxor.u32 %v845, 2147483648
  %v848 = vmul.f32 %v846, 1.442695
  %v849 = vpow.pop %v848
  %v850 = vmul.f32 %v847, 1.442695
  %v851 = vpow.pop %v850
  %v852 = vadd.f32 %v849, 1.0
  %v853 = vadd.f32 %v851, 1.0
  %v854 = vrcp.pop %v852
  %v855 = vmul.f32 1.0, %v854
  %v856 = vrcp.pop %v853
  %v857 = vmul.f32 1.0, %v856
  %v858 = vtanh.pop %v845
  %v859 = vmul.f32 %v855, %v715
  %861 = vrot.lane.b32.xlu0 %v858, 64
  %v862 = vpop.permute.xlu0 %861
  %v864 = vmul.f32 %v855, %v862
  %866 = vrot.lane.b32.xlu0 %v864, 64
  %v867 = vpop.permute.xlu0 %866
  %v869 = vadd.f32 %v859, %v867
  %v870 = vtanh.pop %v869
  %872 = vrot.lane.b32.xlu0 %v870, 64
  %v873 = vpop.permute.xlu0 %872
  %v875 = vmul.f32 %v857, %v873
  %v876 = vpack.c.bf16 %v798, %v798
  %v878 = vsel %vm532, %v876, 0
  %880 = vmatprep.subr.bf16.mxu0 0
  %881 = vmatpush1.bf16.msra.mxu0 0
  %882 = vmatprep.subr.bf16.mxu0 0
  %883 = vmatpush1.bf16.msra.mxu0 0
  %884 = vmatprep.subr.bf16.mxu0 0
  %885 = vmatpush1.bf16.msra.mxu0 0
  %886 = vmatprep.subr.bf16.mxu0 0
  %887 = vmatpush1.bf16.msra.mxu0 0
  %888 = vmatprep.subr.bf16.mxu0 %v523
  %889 = vmatpush1.bf16.msra.mxu0 %v522
  %890 = vmatprep.subr.bf16.mxu0 %v521
  %891 = vmatpush1.bf16.msra.mxu0 %v520
  %892 = vmatprep.subr.bf16.mxu0 %v519
  %893 = vmatpush1.bf16.msra.mxu0 %v518
  %894 = vmatprep.subr.bf16.mxu0 %v517
  %895 = vmatpush1.bf16.msra.mxu0 %v516
  %896 = vmatprep.subr.bf16.mxu0 0
  %897 = vmatpush2.bf16.msra.mxu0 0
  %898 = vmatprep.subr.bf16.mxu0 0
  %899 = vmatpush2.bf16.msra.mxu0 0
  %900 = vmatprep.subr.bf16.mxu0 0
  %901 = vmatpush2.bf16.msra.mxu0 0
  %902 = vmatprep.subr.bf16.mxu0 0
  %903 = vmatpush2.bf16.msra.mxu0 0
  %904 = vmatprep.subr.bf16.mxu0 0
  %905 = vmatpush2.bf16.msra.mxu0 0
  %906 = vmatprep.subr.bf16.mxu0 0
  %907 = vmatpush2.bf16.msra.mxu0 0
  %908 = vmatprep.subr.bf16.mxu0 0
  %909 = vmatpush2.bf16.msra.mxu0 0
  %910 = vmatprep.subr.bf16.mxu0 0
  %911 = vmatpush2.bf16.msra.mxu0 0
  %912 = vmatprep.mubr.bf16.mxu0 0
  %913 = vmatmul.mubr.bf16.gmra.mxu0 %v878
  %v914 = vpop.f32.mrf.mxu0
  %v915 = vadd.f32 0.0, %v914
  %v916 = vpop.f32.mrf.mxu0
  %v917 = vadd.f32 0.0, %v916
  %v918 = vpop.f32.mrf.mxu0
  %v919 = vpop.f32.mrf.mxu0
  %920 = vdwg.mxu0
  %v921 = vadd.f32 %v375, %v915
  %v922 = vadd.f32 %v377, %v917
  %v923 = vxor.u32 %v921, 2147483648
  %v924 = vxor.u32 %v922, 2147483648
  %v925 = vmul.f32 %v923, 1.442695
  %v926 = vpow.pop %v925
  %v927 = vmul.f32 %v924, 1.442695
  %v928 = vpow.pop %v927
  %v929 = vadd.f32 %v926, 1.0
  %v930 = vadd.f32 %v928, 1.0
  %v931 = vrcp.pop %v929
  %v932 = vmul.f32 1.0, %v931
  %v933 = vrcp.pop %v930
  %v934 = vmul.f32 1.0, %v933
  %v935 = vtanh.pop %v922
  %v936 = vmul.f32 %v932, %v792
  %938 = vrot.lane.b32.xlu0 %v935, 64
  %v939 = vpop.permute.xlu0 %938
  %v941 = vmul.f32 %v932, %v939
  %943 = vrot.lane.b32.xlu0 %v941, 64
  %v944 = vpop.permute.xlu0 %943
  %v946 = vadd.f32 %v936, %v944
  %v947 = vtanh.pop %v946
  %949 = vrot.lane.b32.xlu0 %v947, 64
  %v950 = vpop.permute.xlu0 %949
  %v952 = vmul.f32 %v934, %v950
  %v953 = vpack.c.bf16 %v875, %v875
  %v955 = vsel %vm532, %v953, 0
  %957 = vmatprep.subr.bf16.mxu0 0
  %958 = vmatpush1.bf16.msra.mxu0 0
  %959 = vmatprep.subr.bf16.mxu0 0
  %960 = vmatpush1.bf16.msra.mxu0 0
  %961 = vmatprep.subr.bf16.mxu0 0
  %962 = vmatpush1.bf16.msra.mxu0 0
  %963 = vmatprep.subr.bf16.mxu0 0
  %964 = vmatpush1.bf16.msra.mxu0 0
  %965 = vmatprep.subr.bf16.mxu0 %v640
  %966 = vmatpush1.bf16.msra.mxu0 %v639
  %967 = vmatprep.subr.bf16.mxu0 %v638
  %968 = vmatpush1.bf16.msra.mxu0 %v637
  %969 = vmatprep.subr.bf16.mxu0 %v636
  %970 = vmatpush1.bf16.msra.mxu0 %v635
  %971 = vmatprep.subr.bf16.mxu0 %v634
  %972 = vmatpush1.bf16.msra.mxu0 %v633
  %973 = vmatprep.subr.bf16.mxu0 0
  %974 = vmatpush2.bf16.msra.mxu0 0
  %975 = vmatprep.subr.bf16.mxu0 0
  %976 = vmatpush2.bf16.msra.mxu0 0
  %977 = vmatprep.subr.bf16.mxu0 0
  %978 = vmatpush2.bf16.msra.mxu0 0
  %979 = vmatprep.subr.bf16.mxu0 0
  %980 = vmatpush2.bf16.msra.mxu0 0
  %981 = vmatprep.subr.bf16.mxu0 0
  %982 = vmatpush2.bf16.msra.mxu0 0
  %983 = vmatprep.subr.bf16.mxu0 0
  %984 = vmatpush2.bf16.msra.mxu0 0
  %985 = vmatprep.subr.bf16.mxu0 0
  %986 = vmatpush2.bf16.msra.mxu0 0
  %987 = vmatprep.subr.bf16.mxu0 0
  %988 = vmatpush2.bf16.msra.mxu0 0
  %989 = vmatprep.mubr.bf16.mxu0 0
  %990 = vmatmul.mubr.bf16.gmra.mxu0 %v955
  %v991 = vpop.f32.mrf.mxu0
  %v992 = vadd.f32 0.0, %v991
  %v993 = vpop.f32.mrf.mxu0
  %v994 = vadd.f32 0.0, %v993
  %v995 = vpop.f32.mrf.mxu0
  %v996 = vpop.f32.mrf.mxu0
  %997 = vdwg.mxu0
  %v998 = vadd.f32 %v462, %v992
  %v999 = vadd.f32 %v464, %v994
  %v1000 = vxor.u32 %v998, 2147483648
  %v1001 = vxor.u32 %v999, 2147483648
  %v1002 = vmul.f32 %v1000, 1.442695
  %v1003 = vpow.pop %v1002
  %v1004 = vmul.f32 %v1001, 1.442695
  %v1005 = vpow.pop %v1004
  %v1006 = vadd.f32 %v1003, 1.0
  %v1007 = vadd.f32 %v1005, 1.0
  %v1008 = vrcp.pop %v1006
  %v1009 = vmul.f32 1.0, %v1008
  %v1010 = vrcp.pop %v1007
  %v1011 = vmul.f32 1.0, %v1010
  %v1012 = vtanh.pop %v999
  %v1013 = vmul.f32 %v1009, %v869
  %1015 = vrot.lane.b32.xlu0 %v1012, 64
  %v1016 = vpop.permute.xlu0 %1015
  %v1018 = vmul.f32 %v1009, %v1016
  %1020 = vrot.lane.b32.xlu0 %v1018, 64
  %v1021 = vpop.permute.xlu0 %1020
  %v1023 = vadd.f32 %v1013, %v1021
  %v1024 = vtanh.pop %v1023
  %1026 = vrot.lane.b32.xlu0 %v1024, 64
  %v1027 = vpop.permute.xlu0 %1026
  %v1029 = vmul.f32 %v1011, %v1027
  %v1030 = vpack.c.bf16 %v952, %v952
  %v1032 = vsel %vm532, %v1030, 0
  %1034 = vmatprep.subr.bf16.mxu0 0
  %1035 = vmatpush1.bf16.msra.mxu0 0
  %1036 = vmatprep.subr.bf16.mxu0 0
  %1037 = vmatpush1.bf16.msra.mxu0 0
  %1038 = vmatprep.subr.bf16.mxu0 0
  %1039 = vmatpush1.bf16.msra.mxu0 0
  %1040 = vmatprep.subr.bf16.mxu0 0
  %1041 = vmatpush1.bf16.msra.mxu0 0
  %1042 = vmatprep.subr.bf16.mxu0 %v523
  %1043 = vmatpush1.bf16.msra.mxu0 %v522
  %1044 = vmatprep.subr.bf16.mxu0 %v521
  %1045 = vmatpush1.bf16.msra.mxu0 %v520
  %1046 = vmatprep.subr.bf16.mxu0 %v519
  %1047 = vmatpush1.bf16.msra.mxu0 %v518
  %1048 = vmatprep.subr.bf16.mxu0 %v517
  %1049 = vmatpush1.bf16.msra.mxu0 %v516
  %1050 = vmatprep.subr.bf16.mxu0 0
  %1051 = vmatpush2.bf16.msra.mxu0 0
  %1052 = vmatprep.subr.bf16.mxu0 0
  %1053 = vmatpush2.bf16.msra.mxu0 0
  %1054 = vmatprep.subr.bf16.mxu0 0
  %1055 = vmatpush2.bf16.msra.mxu0 0
  %1056 = vmatprep.subr.bf16.mxu0 0
  %1057 = vmatpush2.bf16.msra.mxu0 0
  %1058 = vmatprep.subr.bf16.mxu0 0
  %1059 = vmatpush2.bf16.msra.mxu0 0
  %1060 = vmatprep.subr.bf16.mxu0 0
  %1061 = vmatpush2.bf16.msra.mxu0 0
  %1062 = vmatprep.subr.bf16.mxu0 0
  %1063 = vmatpush2.bf16.msra.mxu0 0
  %1064 = vmatprep.subr.bf16.mxu0 0
  %1065 = vmatpush2.bf16.msra.mxu0 0
  %1066 = vmatprep.mubr.bf16.mxu0 0
  %1067 = vmatmul.mubr.bf16.gmra.mxu0 %v1032
  %v1068 = vpop.f32.mrf.mxu0
  %v1069 = vadd.f32 0.0, %v1068
  %v1070 = vpop.f32.mrf.mxu0
  %v1071 = vadd.f32 0.0, %v1070
  %v1072 = vpop.f32.mrf.mxu0
  %v1073 = vpop.f32.mrf.mxu0
  %1074 = vdwg.mxu0
  %v1075 = vadd.f32 %v379, %v1069
  %v1076 = vadd.f32 %v381, %v1071
  %v1077 = vxor.u32 %v1075, 2147483648
  %v1078 = vxor.u32 %v1076, 2147483648
  %v1079 = vmul.f32 %v1077, 1.442695
  %v1080 = vpow.pop %v1079
  %v1081 = vmul.f32 %v1078, 1.442695
  %v1082 = vpow.pop %v1081
  %v1083 = vadd.f32 %v1080, 1.0
  %v1084 = vadd.f32 %v1082, 1.0
  %v1085 = vrcp.pop %v1083
  %v1086 = vmul.f32 1.0, %v1085
  %v1087 = vrcp.pop %v1084
  %v1088 = vmul.f32 1.0, %v1087
  %v1089 = vtanh.pop %v1076
  %v1090 = vmul.f32 %v1086, %v946
  %1092 = vrot.lane.b32.xlu0 %v1089, 64
  %v1093 = vpop.permute.xlu0 %1092
  %v1095 = vmul.f32 %v1086, %v1093
  %1097 = vrot.lane.b32.xlu0 %v1095, 64
  %v1098 = vpop.permute.xlu0 %1097
  %v1100 = vadd.f32 %v1090, %v1098
  %v1101 = vtanh.pop %v1100
  %1103 = vrot.lane.b32.xlu0 %v1101, 64
  %v1104 = vpop.permute.xlu0 %1103
  %v1106 = vmul.f32 %v1088, %v1104
  %v1107 = vpack.c.bf16 %v1029, %v1029
  %v1109 = vsel %vm532, %v1107, 0
  %1111 = vmatprep.subr.bf16.mxu0 0
  %1112 = vmatpush1.bf16.msra.mxu0 0
  %1113 = vmatprep.subr.bf16.mxu0 0
  %1114 = vmatpush1.bf16.msra.mxu0 0
  %1115 = vmatprep.subr.bf16.mxu0 0
  %1116 = vmatpush1.bf16.msra.mxu0 0
  %1117 = vmatprep.subr.bf16.mxu0 0
  %1118 = vmatpush1.bf16.msra.mxu0 0
  %1119 = vmatprep.subr.bf16.mxu0 %v640
  %1120 = vmatpush1.bf16.msra.mxu0 %v639
  %1121 = vmatprep.subr.bf16.mxu0 %v638
  %1122 = vmatpush1.bf16.msra.mxu0 %v637
  %1123 = vmatprep.subr.bf16.mxu0 %v636
  %1124 = vmatpush1.bf16.msra.mxu0 %v635
  %1125 = vmatprep.subr.bf16.mxu0 %v634
  %1126 = vmatpush1.bf16.msra.mxu0 %v633
  %1127 = vmatprep.subr.bf16.mxu0 0
  %1128 = vmatpush2.bf16.msra.mxu0 0
  %1129 = vmatprep.subr.bf16.mxu0 0
  %1130 = vmatpush2.bf16.msra.mxu0 0
  %1131 = vmatprep.subr.bf16.mxu0 0
  %1132 = vmatpush2.bf16.msra.mxu0 0
  %1133 = vmatprep.subr.bf16.mxu0 0
  %1134 = vmatpush2.bf16.msra.mxu0 0
  %1135 = vmatprep.subr.bf16.mxu0 0
  %1136 = vmatpush2.bf16.msra.mxu0 0
  %1137 = vmatprep.subr.bf16.mxu0 0
  %1138 = vmatpush2.bf16.msra.mxu0 0
  %1139 = vmatprep.subr.bf16.mxu0 0
  %1140 = vmatpush2.bf16.msra.mxu0 0
  %1141 = vmatprep.subr.bf16.mxu0 0
  %1142 = vmatpush2.bf16.msra.mxu0 0
  %1143 = vmatprep.mubr.bf16.mxu0 0
  %1144 = vmatmul.mubr.bf16.gmra.mxu0 %v1109
  %v1145 = vpop.f32.mrf.mxu0
  %v1146 = vadd.f32 0.0, %v1145
  %v1147 = vpop.f32.mrf.mxu0
  %v1148 = vadd.f32 0.0, %v1147
  %v1149 = vpop.f32.mrf.mxu0
  %v1150 = vpop.f32.mrf.mxu0
  %1151 = vdwg.mxu0
  %v1152 = vadd.f32 %v458, %v1146
  %v1153 = vadd.f32 %v460, %v1148
  %v1154 = vxor.u32 %v1152, 2147483648
  %v1155 = vxor.u32 %v1153, 2147483648
  %v1156 = vmul.f32 %v1154, 1.442695
  %v1157 = vpow.pop %v1156
  %v1158 = vmul.f32 %v1155, 1.442695
  %v1159 = vpow.pop %v1158
  %v1160 = vadd.f32 %v1157, 1.0
  %v1161 = vadd.f32 %v1159, 1.0
  %v1162 = vrcp.pop %v1160
  %v1163 = vmul.f32 1.0, %v1162
  %v1164 = vrcp.pop %v1161
  %v1165 = vmul.f32 1.0, %v1164
  %v1166 = vtanh.pop %v1153
  %v1167 = vmul.f32 %v1163, %v1023
  %1169 = vrot.lane.b32.xlu0 %v1166, 64
  %v1170 = vpop.permute.xlu0 %1169
  %v1172 = vmul.f32 %v1163, %v1170
  %1174 = vrot.lane.b32.xlu0 %v1172, 64
  %v1175 = vpop.permute.xlu0 %1174
  %v1177 = vadd.f32 %v1167, %v1175
  %v1178 = vtanh.pop %v1177
  %1180 = vrot.lane.b32.xlu0 %v1178, 64
  %v1181 = vpop.permute.xlu0 %1180
  %v1183 = vmul.f32 %v1165, %v1181
  %v1184 = vpack.c.bf16 %v1106, %v1106
  %v1186 = vsel %vm532, %v1184, 0
  %1188 = vmatprep.subr.bf16.mxu0 0
  %1189 = vmatpush1.bf16.msra.mxu0 0
  %1190 = vmatprep.subr.bf16.mxu0 0
  %1191 = vmatpush1.bf16.msra.mxu0 0
  %1192 = vmatprep.subr.bf16.mxu0 0
  %1193 = vmatpush1.bf16.msra.mxu0 0
  %1194 = vmatprep.subr.bf16.mxu0 0
  %1195 = vmatpush1.bf16.msra.mxu0 0
  %1196 = vmatprep.subr.bf16.mxu0 %v523
  %1197 = vmatpush1.bf16.msra.mxu0 %v522
  %1198 = vmatprep.subr.bf16.mxu0 %v521
  %1199 = vmatpush1.bf16.msra.mxu0 %v520
  %1200 = vmatprep.subr.bf16.mxu0 %v519
  %1201 = vmatpush1.bf16.msra.mxu0 %v518
  %1202 = vmatprep.subr.bf16.mxu0 %v517
  %1203 = vmatpush1.bf16.msra.mxu0 %v516
  %1204 = vmatprep.subr.bf16.mxu0 0
  %1205 = vmatpush2.bf16.msra.mxu0 0
  %1206 = vmatprep.subr.bf16.mxu0 0
  %1207 = vmatpush2.bf16.msra.mxu0 0
  %1208 = vmatprep.subr.bf16.mxu0 0
  %1209 = vmatpush2.bf16.msra.mxu0 0
  %1210 = vmatprep.subr.bf16.mxu0 0
  %1211 = vmatpush2.bf16.msra.mxu0 0
  %1212 = vmatprep.subr.bf16.mxu0 0
  %1213 = vmatpush2.bf16.msra.mxu0 0
  %1214 = vmatprep.subr.bf16.mxu0 0
  %1215 = vmatpush2.bf16.msra.mxu0 0
  %1216 = vmatprep.subr.bf16.mxu0 0
  %1217 = vmatpush2.bf16.msra.mxu0 0
  %1218 = vmatprep.subr.bf16.mxu0 0
  %1219 = vmatpush2.bf16.msra.mxu0 0
  %1220 = vmatprep.mubr.bf16.mxu0 0
  %1221 = vmatmul.mubr.bf16.gmra.mxu0 %v1186
  %v1222 = vpop.f32.mrf.mxu0
  %v1223 = vadd.f32 0.0, %v1222
  %v1224 = vpop.f32.mrf.mxu0
  %v1225 = vadd.f32 0.0, %v1224
  %v1226 = vpop.f32.mrf.mxu0
  %v1227 = vpop.f32.mrf.mxu0
  %1228 = vdwg.mxu0
  %v1229 = vadd.f32 %v385, %v1223
  %v1230 = vadd.f32 %v387, %v1225
  %v1231 = vxor.u32 %v1229, 2147483648
  %v1232 = vxor.u32 %v1230, 2147483648
  %v1233 = vmul.f32 %v1231, 1.442695
  %v1234 = vpow.pop %v1233
  %v1235 = vmul.f32 %v1232, 1.442695
  %v1236 = vpow.pop %v1235
  %v1237 = vadd.f32 %v1234, 1.0
  %v1238 = vadd.f32 %v1236, 1.0
  %v1239 = vrcp.pop %v1237
  %v1240 = vmul.f32 1.0, %v1239
  %v1241 = vrcp.pop %v1238
  %v1242 = vmul.f32 1.0, %v1241
  %v1243 = vtanh.pop %v1230
  %v1244 = vmul.f32 %v1240, %v1100
  %1246 = vrot.lane.b32.xlu0 %v1243, 64
  %v1247 = vpop.permute.xlu0 %1246
  %v1249 = vmul.f32 %v1240, %v1247
  %1251 = vrot.lane.b32.xlu0 %v1249, 64
  %v1252 = vpop.permute.xlu0 %1251
  %v1254 = vadd.f32 %v1244, %v1252
  %v1255 = vtanh.pop %v1254
  %1257 = vrot.lane.b32.xlu0 %v1255, 64
  %v1258 = vpop.permute.xlu0 %1257
  %v1260 = vmul.f32 %v1242, %v1258
  %v1261 = vpack.c.bf16 %v1183, %v1183
  %v1263 = vsel %vm532, %v1261, 0
  %1265 = vmatprep.subr.bf16.mxu0 0
  %1266 = vmatpush1.bf16.msra.mxu0 0
  %1267 = vmatprep.subr.bf16.mxu0 0
  %1268 = vmatpush1.bf16.msra.mxu0 0
  %1269 = vmatprep.subr.bf16.mxu0 0
  %1270 = vmatpush1.bf16.msra.mxu0 0
  %1271 = vmatprep.subr.bf16.mxu0 0
  %1272 = vmatpush1.bf16.msra.mxu0 0
  %1273 = vmatprep.subr.bf16.mxu0 %v640
  %1274 = vmatpush1.bf16.msra.mxu0 %v639
  %1275 = vmatprep.subr.bf16.mxu0 %v638
  %1276 = vmatpush1.bf16.msra.mxu0 %v637
  %1277 = vmatprep.subr.bf16.mxu0 %v636
  %1278 = vmatpush1.bf16.msra.mxu0 %v635
  %1279 = vmatprep.subr.bf16.mxu0 %v634
  %1280 = vmatpush1.bf16.msra.mxu0 %v633
  %1281 = vmatprep.subr.bf16.mxu0 0
  %1282 = vmatpush2.bf16.msra.mxu0 0
  %1283 = vmatprep.subr.bf16.mxu0 0
  %1284 = vmatpush2.bf16.msra.mxu0 0
  %1285 = vmatprep.subr.bf16.mxu0 0
  %1286 = vmatpush2.bf16.msra.mxu0 0
  %1287 = vmatprep.subr.bf16.mxu0 0
  %1288 = vmatpush2.bf16.msra.mxu0 0
  %1289 = vmatprep.subr.bf16.mxu0 0
  %1290 = vmatpush2.bf16.msra.mxu0 0
  %1291 = vmatprep.subr.bf16.mxu0 0
  %1292 = vmatpush2.bf16.msra.mxu0 0
  %1293 = vmatprep.subr.bf16.mxu0 0
  %1294 = vmatpush2.bf16.msra.mxu0 0
  %1295 = vmatprep.subr.bf16.mxu0 0
  %1296 = vmatpush2.bf16.msra.mxu0 0
  %1297 = vmatprep.mubr.bf16.mxu0 0
  %1298 = vmatmul.mubr.bf16.gmra.mxu0 %v1263
  %v1299 = vpop.f32.mrf.mxu0
  %v1300 = vadd.f32 0.0, %v1299
  %v1301 = vpop.f32.mrf.mxu0
  %v1302 = vadd.f32 0.0, %v1301
  %v1303 = vpop.f32.mrf.mxu0
  %v1304 = vpop.f32.mrf.mxu0
  %1305 = vdwg.mxu0
  %v1306 = vadd.f32 %v452, %v1300
  %v1307 = vadd.f32 %v454, %v1302
  %v1308 = vxor.u32 %v1306, 2147483648
  %v1309 = vxor.u32 %v1307, 2147483648
  %v1310 = vmul.f32 %v1308, 1.442695
  %v1311 = vpow.pop %v1310
  %v1312 = vmul.f32 %v1309, 1.442695
  %v1313 = vpow.pop %v1312
  %v1314 = vadd.f32 %v1311, 1.0
  %v1315 = vadd.f32 %v1313, 1.0
  %v1316 = vrcp.pop %v1314
  %v1317 = vmul.f32 1.0, %v1316
  %v1318 = vrcp.pop %v1315
  %v1319 = vmul.f32 1.0, %v1318
  %v1320 = vtanh.pop %v1307
  %v1321 = vmul.f32 %v1317, %v1177
  %1323 = vrot.lane.b32.xlu0 %v1320, 64
  %v1324 = vpop.permute.xlu0 %1323
  %v1326 = vmul.f32 %v1317, %v1324
  %1328 = vrot.lane.b32.xlu0 %v1326, 64
  %v1329 = vpop.permute.xlu0 %1328
  %v1331 = vadd.f32 %v1321, %v1329
  %v1332 = vtanh.pop %v1331
  %1334 = vrot.lane.b32.xlu0 %v1332, 64
  %v1335 = vpop.permute.xlu0 %1334
  %v1337 = vmul.f32 %v1319, %v1335
  %v1338 = vpack.c.bf16 %v1260, %v1260
  %v1340 = vsel %vm532, %v1338, 0
  %1342 = vmatprep.subr.bf16.mxu0 0
  %1343 = vmatpush1.bf16.msra.mxu0 0
  %1344 = vmatprep.subr.bf16.mxu0 0
  %1345 = vmatpush1.bf16.msra.mxu0 0
  %1346 = vmatprep.subr.bf16.mxu0 0
  %1347 = vmatpush1.bf16.msra.mxu0 0
  %1348 = vmatprep.subr.bf16.mxu0 0
  %1349 = vmatpush1.bf16.msra.mxu0 0
  %1350 = vmatprep.subr.bf16.mxu0 %v523
  %1351 = vmatpush1.bf16.msra.mxu0 %v522
  %1352 = vmatprep.subr.bf16.mxu0 %v521
  %1353 = vmatpush1.bf16.msra.mxu0 %v520
  %1354 = vmatprep.subr.bf16.mxu0 %v519
  %1355 = vmatpush1.bf16.msra.mxu0 %v518
  %1356 = vmatprep.subr.bf16.mxu0 %v517
  %1357 = vmatpush1.bf16.msra.mxu0 %v516
  %1358 = vmatprep.subr.bf16.mxu0 0
  %1359 = vmatpush2.bf16.msra.mxu0 0
  %1360 = vmatprep.subr.bf16.mxu0 0
  %1361 = vmatpush2.bf16.msra.mxu0 0
  %1362 = vmatprep.subr.bf16.mxu0 0
  %1363 = vmatpush2.bf16.msra.mxu0 0
  %1364 = vmatprep.subr.bf16.mxu0 0
  %1365 = vmatpush2.bf16.msra.mxu0 0
  %1366 = vmatprep.subr.bf16.mxu0 0
  %1367 = vmatpush2.bf16.msra.mxu0 0
  %1368 = vmatprep.subr.bf16.mxu0 0
  %1369 = vmatpush2.bf16.msra.mxu0 0
  %1370 = vmatprep.subr.bf16.mxu0 0
  %1371 = vmatpush2.bf16.msra.mxu0 0
  %1372 = vmatprep.subr.bf16.mxu0 0
  %1373 = vmatpush2.bf16.msra.mxu0 0
  %1374 = vmatprep.mubr.bf16.mxu0 0
  %1375 = vmatmul.mubr.bf16.gmra.mxu0 %v1340
  %v1376 = vpop.f32.mrf.mxu0
  %v1377 = vadd.f32 0.0, %v1376
  %v1378 = vpop.f32.mrf.mxu0
  %v1379 = vadd.f32 0.0, %v1378
  %v1380 = vpop.f32.mrf.mxu0
  %v1381 = vpop.f32.mrf.mxu0
  %1382 = vdwg.mxu0
  %v1383 = vadd.f32 %v389, %v1377
  %v1384 = vadd.f32 %v391, %v1379
  %v1385 = vxor.u32 %v1383, 2147483648
  %v1386 = vxor.u32 %v1384, 2147483648
  %v1387 = vmul.f32 %v1385, 1.442695
  %v1388 = vpow.pop %v1387
  %v1389 = vmul.f32 %v1386, 1.442695
  %v1390 = vpow.pop %v1389
  %v1391 = vadd.f32 %v1388, 1.0
  %v1392 = vadd.f32 %v1390, 1.0
  %v1393 = vrcp.pop %v1391
  %v1394 = vmul.f32 1.0, %v1393
  %v1395 = vrcp.pop %v1392
  %v1396 = vmul.f32 1.0, %v1395
  %v1397 = vtanh.pop %v1384
  %v1398 = vmul.f32 %v1394, %v1254
  %1400 = vrot.lane.b32.xlu0 %v1397, 64
  %v1401 = vpop.permute.xlu0 %1400
  %v1403 = vmul.f32 %v1394, %v1401
  %1405 = vrot.lane.b32.xlu0 %v1403, 64
  %v1406 = vpop.permute.xlu0 %1405
  %v1408 = vadd.f32 %v1398, %v1406
  %v1409 = vtanh.pop %v1408
  %1411 = vrot.lane.b32.xlu0 %v1409, 64
  %v1412 = vpop.permute.xlu0 %1411
  %v1414 = vmul.f32 %v1396, %v1412
  %v1415 = vpack.c.bf16 %v1337, %v1337
  %v1417 = vsel %vm532, %v1415, 0
  %1419 = vmatprep.subr.bf16.mxu0 0
  %1420 = vmatpush1.bf16.msra.mxu0 0
  %1421 = vmatprep.subr.bf16.mxu0 0
  %1422 = vmatpush1.bf16.msra.mxu0 0
  %1423 = vmatprep.subr.bf16.mxu0 0
  %1424 = vmatpush1.bf16.msra.mxu0 0
  %1425 = vmatprep.subr.bf16.mxu0 0
  %1426 = vmatpush1.bf16.msra.mxu0 0
  %1427 = vmatprep.subr.bf16.mxu0 %v640
  %1428 = vmatpush1.bf16.msra.mxu0 %v639
  %1429 = vmatprep.subr.bf16.mxu0 %v638
  %1430 = vmatpush1.bf16.msra.mxu0 %v637
  %1431 = vmatprep.subr.bf16.mxu0 %v636
  %1432 = vmatpush1.bf16.msra.mxu0 %v635
  %1433 = vmatprep.subr.bf16.mxu0 %v634
  %1434 = vmatpush1.bf16.msra.mxu0 %v633
  %1435 = vmatprep.subr.bf16.mxu0 0
  %1436 = vmatpush2.bf16.msra.mxu0 0
  %1437 = vmatprep.subr.bf16.mxu0 0
  %1438 = vmatpush2.bf16.msra.mxu0 0
  %1439 = vmatprep.subr.bf16.mxu0 0
  %1440 = vmatpush2.bf16.msra.mxu0 0
  %1441 = vmatprep.subr.bf16.mxu0 0
  %1442 = vmatpush2.bf16.msra.mxu0 0
  %1443 = vmatprep.subr.bf16.mxu0 0
  %1444 = vmatpush2.bf16.msra.mxu0 0
  %1445 = vmatprep.subr.bf16.mxu0 0
  %1446 = vmatpush2.bf16.msra.mxu0 0
  %1447 = vmatprep.subr.bf16.mxu0 0
  %1448 = vmatpush2.bf16.msra.mxu0 0
  %1449 = vmatprep.subr.bf16.mxu0 0
  %1450 = vmatpush2.bf16.msra.mxu0 0
  %1451 = vmatprep.mubr.bf16.mxu0 0
  %1452 = vmatmul.mubr.bf16.gmra.mxu0 %v1417
  %v1453 = vpop.f32.mrf.mxu0
  %v1454 = vadd.f32 0.0, %v1453
  %v1455 = vpop.f32.mrf.mxu0
  %v1456 = vadd.f32 0.0, %v1455
  %v1457 = vpop.f32.mrf.mxu0
  %v1458 = vpop.f32.mrf.mxu0
  %1459 = vdwg.mxu0
  %v1460 = vadd.f32 %v448, %v1454
  %v1461 = vadd.f32 %v450, %v1456
  %v1462 = vxor.u32 %v1460, 2147483648
  %v1463 = vxor.u32 %v1461, 2147483648
  %v1464 = vmul.f32 %v1462, 1.442695
  %v1465 = vpow.pop %v1464
  %v1466 = vmul.f32 %v1463, 1.442695
  %v1467 = vpow.pop %v1466
  %v1468 = vadd.f32 %v1465, 1.0
  %v1469 = vadd.f32 %v1467, 1.0
  %v1470 = vrcp.pop %v1468
  %v1471 = vmul.f32 1.0, %v1470
  %v1472 = vrcp.pop %v1469
  %v1473 = vmul.f32 1.0, %v1472
  %v1474 = vtanh.pop %v1461
  %v1475 = vmul.f32 %v1471, %v1331
  %1477 = vrot.lane.b32.xlu0 %v1474, 64
  %v1478 = vpop.permute.xlu0 %1477
  %v1480 = vmul.f32 %v1471, %v1478
  %1482 = vrot.lane.b32.xlu0 %v1480, 64
  %v1483 = vpop.permute.xlu0 %1482
  %v1485 = vadd.f32 %v1475, %v1483
  %v1486 = vtanh.pop %v1485
  %1488 = vrot.lane.b32.xlu0 %v1486, 64
  %v1489 = vpop.permute.xlu0 %1488
  %v1491 = vmul.f32 %v1473, %v1489
  %v1492 = vpack.c.bf16 %v1414, %v1414
  %v1494 = vsel %vm532, %v1492, 0
  %1496 = vmatprep.subr.bf16.mxu0 0
  %1497 = vmatpush1.bf16.msra.mxu0 0
  %1498 = vmatprep.subr.bf16.mxu0 0
  %1499 = vmatpush1.bf16.msra.mxu0 0
  %1500 = vmatprep.subr.bf16.mxu0 0
  %1501 = vmatpush1.bf16.msra.mxu0 0
  %1502 = vmatprep.subr.bf16.mxu0 0
  %1503 = vmatpush1.bf16.msra.mxu0 0
  %1504 = vmatprep.subr.bf16.mxu0 %v523
  %1505 = vmatpush1.bf16.msra.mxu0 %v522
  %1506 = vmatprep.subr.bf16.mxu0 %v521
  %1507 = vmatpush1.bf16.msra.mxu0 %v520
  %1508 = vmatprep.subr.bf16.mxu0 %v519
  %1509 = vmatpush1.bf16.msra.mxu0 %v518
  %1510 = vmatprep.subr.bf16.mxu0 %v517
  %1511 = vmatpush1.bf16.msra.mxu0 %v516
  %1512 = vmatprep.subr.bf16.mxu0 0
  %1513 = vmatpush2.bf16.msra.mxu0 0
  %1514 = vmatprep.subr.bf16.mxu0 0
  %1515 = vmatpush2.bf16.msra.mxu0 0
  %1516 = vmatprep.subr.bf16.mxu0 0
  %1517 = vmatpush2.bf16.msra.mxu0 0
  %1518 = vmatprep.subr.bf16.mxu0 0
  %1519 = vmatpush2.bf16.msra.mxu0 0
  %1520 = vmatprep.subr.bf16.mxu0 0
  %1521 = vmatpush2.bf16.msra.mxu0 0
  %1522 = vmatprep.subr.bf16.mxu0 0
  %1523 = vmatpush2.bf16.msra.mxu0 0
  %1524 = vmatprep.subr.bf16.mxu0 0
  %1525 = vmatpush2.bf16.msra.mxu0 0
  %1526 = vmatprep.subr.bf16.mxu0 0
  %1527 = vmatpush2.bf16.msra.mxu0 0
  %1528 = vmatprep.mubr.bf16.mxu0 0
  %1529 = vmatmul.mubr.bf16.gmra.mxu0 %v1494
  %v1530 = vpop.f32.mrf.mxu0
  %v1531 = vadd.f32 0.0, %v1530
  %v1532 = vpop.f32.mrf.mxu0
  %v1533 = vadd.f32 0.0, %v1532
  %v1534 = vpop.f32.mrf.mxu0
  %v1535 = vpop.f32.mrf.mxu0
  %1536 = vdwg.mxu0
  %v1537 = vadd.f32 %v395, %v1531
  %v1538 = vadd.f32 %v397, %v1533
  %v1539 = vxor.u32 %v1537, 2147483648
  %v1540 = vxor.u32 %v1538, 2147483648
  %v1541 = vmul.f32 %v1539, 1.442695
  %v1542 = vpow.pop %v1541
  %v1543 = vmul.f32 %v1540, 1.442695
  %v1544 = vpow.pop %v1543
  %v1545 = vadd.f32 %v1542, 1.0
  %v1546 = vadd.f32 %v1544, 1.0
  %v1547 = vrcp.pop %v1545
  %v1548 = vmul.f32 1.0, %v1547
  %v1549 = vrcp.pop %v1546
  %v1550 = vmul.f32 1.0, %v1549
  %v1551 = vtanh.pop %v1538
  %v1552 = vmul.f32 %v1548, %v1408
  %1554 = vrot.lane.b32.xlu0 %v1551, 64
  %v1555 = vpop.permute.xlu0 %1554
  %v1557 = vmul.f32 %v1548, %v1555
  %1559 = vrot.lane.b32.xlu0 %v1557, 64
  %v1560 = vpop.permute.xlu0 %1559
  %v1562 = vadd.f32 %v1552, %v1560
  %v1563 = vtanh.pop %v1562
  %1565 = vrot.lane.b32.xlu0 %v1563, 64
  %v1566 = vpop.permute.xlu0 %1565
  %v1568 = vmul.f32 %v1550, %v1566
  %v1569 = vpack.c.bf16 %v1491, %v1491
  %v1571 = vsel %vm532, %v1569, 0
  %1573 = vmatprep.subr.bf16.mxu0 0
  %1574 = vmatpush1.bf16.msra.mxu0 0
  %1575 = vmatprep.subr.bf16.mxu0 0
  %1576 = vmatpush1.bf16.msra.mxu0 0
  %1577 = vmatprep.subr.bf16.mxu0 0
  %1578 = vmatpush1.bf16.msra.mxu0 0
  %1579 = vmatprep.subr.bf16.mxu0 0
  %1580 = vmatpush1.bf16.msra.mxu0 0
  %1581 = vmatprep.subr.bf16.mxu0 %v640
  %1582 = vmatpush1.bf16.msra.mxu0 %v639
  %1583 = vmatprep.subr.bf16.mxu0 %v638
  %1584 = vmatpush1.bf16.msra.mxu0 %v637
  %1585 = vmatprep.subr.bf16.mxu0 %v636
  %1586 = vmatpush1.bf16.msra.mxu0 %v635
  %1587 = vmatprep.subr.bf16.mxu0 %v634
  %1588 = vmatpush1.bf16.msra.mxu0 %v633
  %1589 = vmatprep.subr.bf16.mxu0 0
  %1590 = vmatpush2.bf16.msra.mxu0 0
  %1591 = vmatprep.subr.bf16.mxu0 0
  %1592 = vmatpush2.bf16.msra.mxu0 0
  %1593 = vmatprep.subr.bf16.mxu0 0
  %1594 = vmatpush2.bf16.msra.mxu0 0
  %1595 = vmatprep.subr.bf16.mxu0 0
  %1596 = vmatpush2.bf16.msra.mxu0 0
  %1597 = vmatprep.subr.bf16.mxu0 0
  %1598 = vmatpush2.bf16.msra.mxu0 0
  %1599 = vmatprep.subr.bf16.mxu0 0
  %1600 = vmatpush2.bf16.msra.mxu0 0
  %1601 = vmatprep.subr.bf16.mxu0 0
  %1602 = vmatpush2.bf16.msra.mxu0 0
  %1603 = vmatprep.subr.bf16.mxu0 0
  %1604 = vmatpush2.bf16.msra.mxu0 0
  %1605 = vmatprep.mubr.bf16.mxu0 0
  %1606 = vmatmul.mubr.bf16.gmra.mxu0 %v1571
  %v1607 = vpop.f32.mrf.mxu0
  %v1608 = vadd.f32 0.0, %v1607
  %v1609 = vpop.f32.mrf.mxu0
  %v1610 = vadd.f32 0.0, %v1609
  %v1611 = vpop.f32.mrf.mxu0
  %v1612 = vpop.f32.mrf.mxu0
  %1613 = vdwg.mxu0
  %v1614 = vadd.f32 %v442, %v1608
  %v1615 = vadd.f32 %v444, %v1610
  %v1616 = vxor.u32 %v1614, 2147483648
  %v1617 = vxor.u32 %v1615, 2147483648
  %v1618 = vmul.f32 %v1616, 1.442695
  %v1619 = vpow.pop %v1618
  %v1620 = vmul.f32 %v1617, 1.442695
  %v1621 = vpow.pop %v1620
  %v1622 = vadd.f32 %v1619, 1.0
  %v1623 = vadd.f32 %v1621, 1.0
  %v1624 = vrcp.pop %v1622
  %v1625 = vmul.f32 1.0, %v1624
  %v1626 = vrcp.pop %v1623
  %v1627 = vmul.f32 1.0, %v1626
  %v1628 = vtanh.pop %v1615
  %v1629 = vmul.f32 %v1625, %v1485
  %1631 = vrot.lane.b32.xlu0 %v1628, 64
  %v1632 = vpop.permute.xlu0 %1631
  %v1634 = vmul.f32 %v1625, %v1632
  %1636 = vrot.lane.b32.xlu0 %v1634, 64
  %v1637 = vpop.permute.xlu0 %1636
  %v1639 = vadd.f32 %v1629, %v1637
  %v1640 = vtanh.pop %v1639
  %1642 = vrot.lane.b32.xlu0 %v1640, 64
  %v1643 = vpop.permute.xlu0 %1642
  %v1645 = vmul.f32 %v1627, %v1643
  %v1646 = vpack.c.bf16 %v1568, %v1568
  %v1648 = vsel %vm532, %v1646, 0
  %1650 = vmatprep.subr.bf16.mxu0 0
  %1651 = vmatpush1.bf16.msra.mxu0 0
  %1652 = vmatprep.subr.bf16.mxu0 0
  %1653 = vmatpush1.bf16.msra.mxu0 0
  %1654 = vmatprep.subr.bf16.mxu0 0
  %1655 = vmatpush1.bf16.msra.mxu0 0
  %1656 = vmatprep.subr.bf16.mxu0 0
  %1657 = vmatpush1.bf16.msra.mxu0 0
  %1658 = vmatprep.subr.bf16.mxu0 %v523
  %1659 = vmatpush1.bf16.msra.mxu0 %v522
  %1660 = vmatprep.subr.bf16.mxu0 %v521
  %1661 = vmatpush1.bf16.msra.mxu0 %v520
  %1662 = vmatprep.subr.bf16.mxu0 %v519
  %1663 = vmatpush1.bf16.msra.mxu0 %v518
  %1664 = vmatprep.subr.bf16.mxu0 %v517
  %1665 = vmatpush1.bf16.msra.mxu0 %v516
  %1666 = vmatprep.subr.bf16.mxu0 0
  %1667 = vmatpush2.bf16.msra.mxu0 0
  %1668 = vmatprep.subr.bf16.mxu0 0
  %1669 = vmatpush2.bf16.msra.mxu0 0
  %1670 = vmatprep.subr.bf16.mxu0 0
  %1671 = vmatpush2.bf16.msra.mxu0 0
  %1672 = vmatprep.subr.bf16.mxu0 0
  %1673 = vmatpush2.bf16.msra.mxu0 0
  %1674 = vmatprep.subr.bf16.mxu0 0
  %1675 = vmatpush2.bf16.msra.mxu0 0
  %1676 = vmatprep.subr.bf16.mxu0 0
  %1677 = vmatpush2.bf16.msra.mxu0 0
  %1678 = vmatprep.subr.bf16.mxu0 0
  %1679 = vmatpush2.bf16.msra.mxu0 0
  %1680 = vmatprep.subr.bf16.mxu0 0
  %1681 = vmatpush2.bf16.msra.mxu0 0
  %1682 = vmatprep.mubr.bf16.mxu0 0
  %1683 = vmatmul.mubr.bf16.gmra.mxu0 %v1648
  %v1684 = vpop.f32.mrf.mxu0
  %v1685 = vadd.f32 0.0, %v1684
  %v1686 = vpop.f32.mrf.mxu0
  %v1687 = vadd.f32 0.0, %v1686
  %v1688 = vpop.f32.mrf.mxu0
  %v1689 = vpop.f32.mrf.mxu0
  %1690 = vdwg.mxu0
  %v1691 = vadd.f32 %v399, %v1685
  %v1692 = vadd.f32 %v401, %v1687
  %v1693 = vxor.u32 %v1691, 2147483648
  %v1694 = vxor.u32 %v1692, 2147483648
  %v1695 = vmul.f32 %v1693, 1.442695
  %v1696 = vpow.pop %v1695
  %v1697 = vmul.f32 %v1694, 1.442695
  %v1698 = vpow.pop %v1697
  %v1699 = vadd.f32 %v1696, 1.0
  %v1700 = vadd.f32 %v1698, 1.0
  %v1701 = vrcp.pop %v1699
  %v1702 = vmul.f32 1.0, %v1701
  %v1703 = vrcp.pop %v1700
  %v1704 = vmul.f32 1.0, %v1703
  %v1705 = vtanh.pop %v1692
  %v1706 = vmul.f32 %v1702, %v1562
  %1708 = vrot.lane.b32.xlu0 %v1705, 64
  %v1709 = vpop.permute.xlu0 %1708
  %v1711 = vmul.f32 %v1702, %v1709
  %1713 = vrot.lane.b32.xlu0 %v1711, 64
  %v1714 = vpop.permute.xlu0 %1713
  %v1716 = vadd.f32 %v1706, %v1714
  %v1717 = vtanh.pop %v1716
  %1719 = vrot.lane.b32.xlu0 %v1717, 64
  %v1720 = vpop.permute.xlu0 %1719
  %v1722 = vmul.f32 %v1704, %v1720
  %v1723 = vpack.c.bf16 %v1645, %v1645
  %v1725 = vsel %vm532, %v1723, 0
  %1727 = vmatprep.subr.bf16.mxu0 0
  %1728 = vmatpush1.bf16.msra.mxu0 0
  %1729 = vmatprep.subr.bf16.mxu0 0
  %1730 = vmatpush1.bf16.msra.mxu0 0
  %1731 = vmatprep.subr.bf16.mxu0 0
  %1732 = vmatpush1.bf16.msra.mxu0 0
  %1733 = vmatprep.subr.bf16.mxu0 0
  %1734 = vmatpush1.bf16.msra.mxu0 0
  %1735 = vmatprep.subr.bf16.mxu0 %v640
  %1736 = vmatpush1.bf16.msra.mxu0 %v639
  %1737 = vmatprep.subr.bf16.mxu0 %v638
  %1738 = vmatpush1.bf16.msra.mxu0 %v637
  %1739 = vmatprep.subr.bf16.mxu0 %v636
  %1740 = vmatpush1.bf16.msra.mxu0 %v635
  %1741 = vmatprep.subr.bf16.mxu0 %v634
  %1742 = vmatpush1.bf16.msra.mxu0 %v633
  %1743 = vmatprep.subr.bf16.mxu0 0
  %1744 = vmatpush2.bf16.msra.mxu0 0
  %1745 = vmatprep.subr.bf16.mxu0 0
  %1746 = vmatpush2.bf16.msra.mxu0 0
  %1747 = vmatprep.subr.bf16.mxu0 0
  %1748 = vmatpush2.bf16.msra.mxu0 0
  %1749 = vmatprep.subr.bf16.mxu0 0
  %1750 = vmatpush2.bf16.msra.mxu0 0
  %1751 = vmatprep.subr.bf16.mxu0 0
  %1752 = vmatpush2.bf16.msra.mxu0 0
  %1753 = vmatprep.subr.bf16.mxu0 0
  %1754 = vmatpush2.bf16.msra.mxu0 0
  %1755 = vmatprep.subr.bf16.mxu0 0
  %1756 = vmatpush2.bf16.msra.mxu0 0
  %1757 = vmatprep.subr.bf16.mxu0 0
  %1758 = vmatpush2.bf16.msra.mxu0 0
  %1759 = vmatprep.mubr.bf16.mxu0 0
  %1760 = vmatmul.mubr.bf16.gmra.mxu0 %v1725
  %v1761 = vpop.f32.mrf.mxu0
  %v1762 = vadd.f32 0.0, %v1761
  %v1763 = vpop.f32.mrf.mxu0
  %v1764 = vadd.f32 0.0, %v1763
  %v1765 = vpop.f32.mrf.mxu0
  %v1766 = vpop.f32.mrf.mxu0
  %1767 = vdwg.mxu0
  %v1768 = vadd.f32 %v438, %v1762
  %v1769 = vadd.f32 %v440, %v1764
  %v1770 = vxor.u32 %v1768, 2147483648
  %v1771 = vxor.u32 %v1769, 2147483648
  %v1772 = vmul.f32 %v1770, 1.442695
  %v1773 = vpow.pop %v1772
  %v1774 = vmul.f32 %v1771, 1.442695
  %v1775 = vpow.pop %v1774
  %v1776 = vadd.f32 %v1773, 1.0
  %v1777 = vadd.f32 %v1775, 1.0
  %v1778 = vrcp.pop %v1776
  %v1779 = vmul.f32 1.0, %v1778
  %v1780 = vrcp.pop %v1777
  %v1781 = vmul.f32 1.0, %v1780
  %v1782 = vtanh.pop %v1769
  %v1783 = vmul.f32 %v1779, %v1639
  %1785 = vrot.lane.b32.xlu0 %v1782, 64
  %v1786 = vpop.permute.xlu0 %1785
  %v1788 = vmul.f32 %v1779, %v1786
  %1790 = vrot.lane.b32.xlu0 %v1788, 64
  %v1791 = vpop.permute.xlu0 %1790
  %v1793 = vadd.f32 %v1783, %v1791
  %v1794 = vtanh.pop %v1793
  %1796 = vrot.lane.b32.xlu0 %v1794, 64
  %v1797 = vpop.permute.xlu0 %1796
  %v1799 = vmul.f32 %v1781, %v1797
  %v1800 = vld [vmem:[%s6] sm:$0x1]
  %v1801 = vld [vmem:[#allocation2] sm:$0x1]
  %1803 = vrot.lane.b32.xlu0 %v1799, 64
  %v1804 = vpop.permute.xlu0 %1803
  %v1806 = vsel %vm532, %v608, %v1804
  %1808 = vrot.lane.b32.xlu0 %v1645, 64
  %v1809 = vpop.permute.xlu0 %1808
  %v1811 = vsel %vm532, %v798, %v1809
  %1813 = vrot.lane.b32.xlu0 %v1491, 64
  %v1814 = vpop.permute.xlu0 %1813
  %v1816 = vsel %vm532, %v952, %v1814
  %1818 = vrot.lane.b32.xlu0 %v1337, 64
  %v1819 = vpop.permute.xlu0 %1818
  %v1821 = vsel %vm532, %v1106, %v1819
  %1823 = vrot.lane.b32.xlu0 %v1183, 64
  %v1824 = vpop.permute.xlu0 %1823
  %v1826 = vsel %vm532, %v1260, %v1824
  %1828 = vrot.lane.b32.xlu0 %v1029, 64
  %v1829 = vpop.permute.xlu0 %1828
  %v1831 = vsel %vm532, %v1414, %v1829
  %1833 = vrot.lane.b32.xlu0 %v875, 64
  %v1834 = vpop.permute.xlu0 %1833
  %v1836 = vsel %vm532, %v1568, %v1834
  %1838 = vrot.lane.b32.xlu0 %v721, 64
  %v1839 = vpop.permute.xlu0 %1838
  %v1841 = vsel %vm532, %v1722, %v1839
  %v1843 = vlaneseq
  %v1844 = vshrl.u32 %v1843, 7
  %v1845 = vsub.s32 0, %v1844
  %v1846 = vrot.slane %v1800, %v1845
  %v1848 = vmul.f32 %v1806, %v1846
  %1849 = vadd.xlane.f32.xlu0 %v1848
  %v1850 = vpop.xlane.xlu0 %1849
  %v1852 = vlaneseq
  %v1853 = vshrl.u32 %v1852, 7
  %v1854 = vsub.s32 0, %v1853
  %v1855 = vrot.slane %v1801, %v1854
  %v1857 = vadd.f32 %v1850, %v1855
  %vm1858 = vcmp.gt.f32.partialorder %v40, 0.5
  %v1859 = vsel %vm1858, -100000.0, %v1857
  %v1860 = vmul.f32 %v1811, %v1846
  %1861 = vadd.xlane.f32.xlu0 %v1860
  %v1862 = vpop.xlane.xlu0 %1861
  %v1863 = vadd.f32 %v1862, %v1855
  %vm1864 = vcmp.gt.f32.partialorder %v41, 0.5
  %v1865 = vsel %vm1864, -100000.0, %v1863
  %v1866 = vmul.f32 %v1816, %v1846
  %1867 = vadd.xlane.f32.xlu0 %v1866
  %v1868 = vpop.xlane.xlu0 %1867
  %v1869 = vadd.f32 %v1868, %v1855
  %vm1870 = vcmp.gt.f32.partialorder %v42, 0.5
  %v1871 = vsel %vm1870, -100000.0, %v1869
  %v1872 = vmul.f32 %v1821, %v1846
  %1873 = vadd.xlane.f32.xlu0 %v1872
  %v1874 = vpop.xlane.xlu0 %1873
  %v1875 = vadd.f32 %v1874, %v1855
  %vm1876 = vcmp.gt.f32.partialorder %v43, 0.5
  %v1877 = vsel %vm1876, -100000.0, %v1875
  %v1878 = vmul.f32 %v1826, %v1846
  %1879 = vadd.xlane.f32.xlu0 %v1878
  %v1880 = vpop.xlane.xlu0 %1879
  %v1881 = vadd.f32 %v1880, %v1855
  %vm1882 = vcmp.gt.f32.partialorder %v44, 0.5
  %v1883 = vsel %vm1882, -100000.0, %v1881
  %v1884 = vmul.f32 %v1831, %v1846
  %1885 = vadd.xlane.f32.xlu0 %v1884
  %v1886 = vpop.xlane.xlu0 %1885
  %v1887 = vadd.f32 %v1886, %v1855
  %vm1888 = vcmp.gt.f32.partialorder %v45, 0.5
  %v1889 = vsel %vm1888, -100000.0, %v1887
  %v1890 = vmul.f32 %v1836, %v1846
  %1891 = vadd.xlane.f32.xlu0 %v1890
  %v1892 = vpop.xlane.xlu0 %1891
  %v1893 = vadd.f32 %v1892, %v1855
  %vm1894 = vcmp.gt.f32.partialorder %v46, 0.5
  %v1895 = vsel %vm1894, -100000.0, %v1893
  %v1896 = vmul.f32 %v1841, %v1846
  %1897 = vadd.xlane.f32.xlu0 %v1896
  %v1898 = vpop.xlane.xlu0 %1897
  %v1899 = vadd.f32 %v1898, %v1855
  %vm1900 = vcmp.gt.f32.partialorder %v47, 0.5
  %v1901 = vsel %vm1900, -100000.0, %v1899
  %v1902 = vmax.f32 %v1859, %v1865
  %v1903 = vmax.f32 %v1902, %v1871
  %v1904 = vmax.f32 %v1903, %v1877
  %v1905 = vmax.f32 %v1904, %v1883
  %v1906 = vmax.f32 %v1905, %v1889
  %v1907 = vmax.f32 %v1906, %v1895
  %v1908 = vmax.f32 %v1907, %v1901
  %v1909 = vsub.f32 %v1859, %v1908
  %v1910 = vmul.f32 %v1909, 1.442695
  %v1911 = vpow.pop %v1910
  %v1912 = vsub.f32 %v1865, %v1908
  %v1913 = vmul.f32 %v1912, 1.442695
  %v1914 = vpow.pop %v1913
  %v1915 = vsub.f32 %v1871, %v1908
  %v1916 = vmul.f32 %v1915, 1.442695
  %v1917 = vpow.pop %v1916
  %v1918 = vsub.f32 %v1877, %v1908
  %v1919 = vmul.f32 %v1918, 1.442695
  %v1920 = vpow.pop %v1919
  %v1921 = vsub.f32 %v1883, %v1908
  %v1922 = vmul.f32 %v1921, 1.442695
  %v1923 = vpow.pop %v1922
  %v1924 = vsub.f32 %v1889, %v1908
  %v1925 = vmul.f32 %v1924, 1.442695
  %v1926 = vpow.pop %v1925
  %v1927 = vsub.f32 %v1895, %v1908
  %v1928 = vmul.f32 %v1927, 1.442695
  %v1929 = vpow.pop %v1928
  %v1930 = vsub.f32 %v1901, %v1908
  %v1931 = vmul.f32 %v1930, 1.442695
  %v1932 = vpow.pop %v1931
  %v1933 = vadd.f32 %v1911, %v1914
  %v1934 = vadd.f32 %v1933, %v1917
  %v1935 = vadd.f32 %v1934, %v1920
  %v1936 = vadd.f32 %v1935, %v1923
  %v1937 = vadd.f32 %v1936, %v1926
  %v1938 = vadd.f32 %v1937, %v1929
  %v1939 = vadd.f32 %v1938, %v1932
  %v1940 = vrcp.pop %v1939
  %v1941 = vmul.f32 %v1911, %v1940
  %1943 = vset.pattern.permute.xlu0 0
  %1944 = vperm.xlu0 %1943, %v1941
  %v1945 = vpop.permute.xlu0 %1944
  %v1947 = vmul.f32 %v1945, %v1806
  %v1948 = vmul.f32 %v1914, %v1940
  %1950 = vset.pattern.permute.xlu0 0
  %1951 = vperm.xlu0 %1950, %v1948
  %v1952 = vpop.permute.xlu0 %1951
  %v1954 = vmul.f32 %v1952, %v1811
  %v1955 = vadd.f32 %v1947, %v1954
  %v1956 = vmul.f32 %v1917, %v1940
  %1958 = vset.pattern.permute.xlu0 0
  %1959 = vperm.xlu0 %1958, %v1956
  %v1960 = vpop.permute.xlu0 %1959
  %v1962 = vmul.f32 %v1960, %v1816
  %v1963 = vadd.f32 %v1955, %v1962
  %v1964 = vmul.f32 %v1920, %v1940
  %1966 = vset.pattern.permute.xlu0 0
  %1967 = vperm.xlu0 %1966, %v1964
  %v1968 = vpop.permute.xlu0 %1967
  %v1970 = vmul.f32 %v1968, %v1821
  %v1971 = vadd.f32 %v1963, %v1970
  %v1972 = vmul.f32 %v1923, %v1940
  %1974 = vset.pattern.permute.xlu0 0
  %1975 = vperm.xlu0 %1974, %v1972
  %v1976 = vpop.permute.xlu0 %1975
  %v1978 = vmul.f32 %v1976, %v1826
  %v1979 = vadd.f32 %v1971, %v1978
  %v1980 = vmul.f32 %v1926, %v1940
  %1982 = vset.pattern.permute.xlu0 0
  %1983 = vperm.xlu0 %1982, %v1980
  %v1984 = vpop.permute.xlu0 %1983
  %v1986 = vmul.f32 %v1984, %v1831
  %v1987 = vadd.f32 %v1979, %v1986
  %v1988 = vmul.f32 %v1929, %v1940
  %1990 = vset.pattern.permute.xlu0 0
  %1991 = vperm.xlu0 %1990, %v1988
  %v1992 = vpop.permute.xlu0 %1991
  %v1994 = vmul.f32 %v1992, %v1836
  %v1995 = vadd.f32 %v1987, %v1994
  %v1996 = vmul.f32 %v1932, %v1940
  %1998 = vset.pattern.permute.xlu0 0
  %1999 = vperm.xlu0 %1998, %v1996
  %v2000 = vpop.permute.xlu0 %1999
  %v2002 = vmul.f32 %v2000, %v1841
  %v2003 = vadd.f32 %v1995, %v2002
  %v2004 = vpack.c.bf16 %v2003, %v2003
  %v2005 = vld [vmem:[%s8] sm:$0xf]
  %v2006 = vld [vmem:[%s8 + $0x4] sm:$0xf]
  %v2007 = vld [vmem:[%s8 + $0x8] sm:$0xf]
  %v2008 = vld [vmem:[%s8 + $0xc] sm:$0xf]
  %v2009 = vld [vmem:[%s8 + $0x10] sm:$0xf]
  %v2010 = vld [vmem:[%s8 + $0x14] sm:$0xf]
  %v2011 = vld [vmem:[%s8 + $0x18] sm:$0xf]
  %v2012 = vld [vmem:[%s8 + $0x1c] sm:$0xf]
  %v2013 = vld [vmem:[%s8 + $0x20] sm:$0xf]
  %v2014 = vld [vmem:[%s8 + $0x24] sm:$0xf]
  %v2015 = vld [vmem:[%s8 + $0x28] sm:$0xf]
  %v2016 = vld [vmem:[%s8 + $0x2c] sm:$0xf]
  %v2017 = vld [vmem:[%s8 + $0x30] sm:$0xf]
  %v2018 = vld [vmem:[%s8 + $0x34] sm:$0xf]
  %v2019 = vld [vmem:[%s8 + $0x38] sm:$0xf]
  %v2020 = vld [vmem:[%s8 + $0x3c] sm:$0xf]
  %v2021 = vld [vmem:[%s9] sm:$0x1]
  %v2023 = vlaneseq
  %v2024 = vshrl.u32 %v2023, 7
  %v2025 = vsub.s32 0, %v2024
  %v2026 = vrot.slane %v2021, %v2025
  %v2044 = vunpack.c.l.b16 %v2005
  %v2045 = vunpack.c.l.b16 %v2006
  %v2046 = vunpack.c.l.b16 %v2007
  %v2047 = vunpack.c.l.b16 %v2008
  %v2048 = vunpack.c.l.b16 %v2009
  %v2049 = vunpack.c.l.b16 %v2010
  %v2050 = vunpack.c.l.b16 %v2011
  %v2051 = vunpack.c.l.b16 %v2012
  %v2052 = vunpack.c.l.b16 %v2013
  %v2053 = vunpack.c.l.b16 %v2014
  %v2054 = vunpack.c.l.b16 %v2015
  %v2055 = vunpack.c.l.b16 %v2016
  %v2056 = vunpack.c.l.b16 %v2017
  %v2057 = vunpack.c.l.b16 %v2018
  %v2058 = vunpack.c.l.b16 %v2019
  %v2059 = vunpack.c.l.b16 %v2020
  %v2060 = vpack.c.b16 %v2045, %v2044
  %v2061 = vpack.c.b16 %v2047, %v2046
  %v2062 = vpack.c.b16 %v2049, %v2048
  %v2063 = vpack.c.b16 %v2051, %v2050
  %v2064 = vpack.c.b16 %v2053, %v2052
  %v2065 = vpack.c.b16 %v2055, %v2054
  %v2066 = vpack.c.b16 %v2057, %v2056
  %v2067 = vpack.c.b16 %v2059, %v2058
  %2076 = vmatprep.subr.bf16.mxu0 0
  %2077 = vmatpush1.bf16.msra.mxu0 %v2067
  %2078 = vmatprep.subr.bf16.mxu0 0
  %2079 = vmatpush1.bf16.msra.mxu0 %v2066
  %2080 = vmatprep.subr.bf16.mxu0 0
  %2081 = vmatpush1.bf16.msra.mxu0 %v2065
  %2082 = vmatprep.subr.bf16.mxu0 0
  %2083 = vmatpush1.bf16.msra.mxu0 %v2064
  %2084 = vmatprep.subr.bf16.mxu0 0
  %2085 = vmatpush1.bf16.msra.mxu0 %v2063
  %2086 = vmatprep.subr.bf16.mxu0 0
  %2087 = vmatpush1.bf16.msra.mxu0 %v2062
  %2088 = vmatprep.subr.bf16.mxu0 0
  %2089 = vmatpush1.bf16.msra.mxu0 %v2061
  %2090 = vmatprep.subr.bf16.mxu0 0
  %2091 = vmatpush1.bf16.msra.mxu0 %v2060
  %2092 = vmatprep.subr.bf16.mxu0 0
  %2093 = vmatpush2.bf16.msra.mxu0 0
  %2094 = vmatprep.subr.bf16.mxu0 0
  %2095 = vmatpush2.bf16.msra.mxu0 0
  %2096 = vmatprep.subr.bf16.mxu0 0
  %2097 = vmatpush2.bf16.msra.mxu0 0
  %2098 = vmatprep.subr.bf16.mxu0 0
  %2099 = vmatpush2.bf16.msra.mxu0 0
  %2100 = vmatprep.subr.bf16.mxu0 0
  %2101 = vmatpush2.bf16.msra.mxu0 0
  %2102 = vmatprep.subr.bf16.mxu0 0
  %2103 = vmatpush2.bf16.msra.mxu0 0
  %2104 = vmatprep.subr.bf16.mxu0 0
  %2105 = vmatpush2.bf16.msra.mxu0 0
  %2106 = vmatprep.subr.bf16.mxu0 0
  %2107 = vmatpush2.bf16.msra.mxu0 0
  %2108 = vmatprep.mubr.bf16.mxu0 0
  %2109 = vmatmul.mubr.bf16.gmra.mxu0 %v2004
  %v2110 = vpop.f32.mrf.mxu0
  %v2111 = vadd.f32 %v2026, %v2110
  %v2112 = vpop.f32.mrf.mxu0
  %v2113 = vpop.f32.mrf.mxu0
  %v2114 = vpop.f32.mrf.mxu0
  %2115 = vdwg.mxu0
  %2116 = vst.msk [vmem:[%s10] sm:$0xff] %vm532, %v2111
  %v2117 = vmul.f32 %v2111, 1.442695
  %v2118 = vpow.pop %v2117
  %2120 = vrot.lane.b32.xlu0 %v2118, 64
  %v2121 = vpop.permute.xlu0 %2120
  %vm2123 = vcmask 7168
  %2124 = vst.msk [vmem:[%s11] sm:$0xff] %vm2123, %v2121
  // Predicated region
  $region42: #{bsg_encoder_pallas.1} parent=0 // pred_check
    _
  $region43: #{bsg_encoder_pallas.1} parent=0 // pred_check_branch
    %2126 = sbr.rel (0) target = $region45
  $region44: #{bsg_encoder_pallas.1} parent=0 // pred_region
    _
  $region45: #{bsg_encoder_pallas.1} parent=0 // pred_fallthru
    _
  // Predicated region
  $region46: #{bsg_encoder_pallas.1} parent=0 // pred_check
    _
  $region47: #{bsg_encoder_pallas.1} parent=0 // pred_check_branch
    %2128 = sbr.rel (0) target = $region49
  $region48: #{bsg_encoder_pallas.1} parent=0 // pred_region
    _
  $region49: #{bsg_encoder_pallas.1} parent=0 // pred_fallthru
    _
  // Predicated region
  $region50: #{bsg_encoder_pallas.1} parent=0 // pred_check
    _
  $region51: #{bsg_encoder_pallas.1} parent=0 // pred_check_branch
    %2130 = sbr.rel (0) target = $region53
  $region52: #{bsg_encoder_pallas.1} parent=0 // pred_region
    _
  $region53: #{bsg_encoder_pallas.1} parent=0 // pred_fallthru
    _
  // Predicated region
  $region54: #{bsg_encoder_pallas.1} parent=0 // pred_check
    _
  $region55: #{bsg_encoder_pallas.1} parent=0 // pred_check_branch
    %2132 = sbr.rel (0) target = $region57
  $region56: #{bsg_encoder_pallas.1} parent=0 // pred_region
    _
  $region57: #{bsg_encoder_pallas.1} parent=0 // pred_fallthru
    _

</llo_original>
